<compile_context>
chip_gen: v7x
topology: tpu7x:2x2x1
jax: 0.10.0
libtpu: 0.0.40
codegen_flags: <defaults>
</compile_context>

<pallas_src>
import functools
import math

import jax
import jax.numpy as jnp
from jax import lax
from jax.experimental import pallas as pl
from jax.experimental.pallas import tpu as pltpu  # noqa: F401  (TPU backend / future tiling knobs)

EPS = 1e-5
NEG_INF = -1e9  # large finite negative bias; avoids -inf -> NaN on masked rows


# ----------------------------------------------------------------------------- kernel

def decoder_layer_kernel(
    x_ref, enc_ref, self_bias_ref, cross_bias_ref,
    wqkv_s_ref, bqkv_s_ref, wo_s_ref, bo_s_ref,
    wq_c_ref, bq_c_ref, wkv_c_ref, bkv_c_ref, wo_c_ref, bo_c_ref,
    w1_ref, fb1_ref, w2_ref, fb2_ref,
    g1_ref, n1b_ref, g2_ref, n2b_ref, g3_ref, n3b_ref,
    o_ref, *, batch, head_count):
    """Whole DecoderLayer forward for all batch elements in one kernel invocation."""
    B = batch
    _, S, E = x_ref.shape
    T = enc_ref.shape[1]
    H = head_count
    Dh = E // H
    inv_sqrt_dk = 1.0 / math.sqrt(Dh)

    # Fold batch into rows: all dense matmuls see M = B*S (or B*T) rows.
    x = x_ref[...].reshape(B * S, E)          # (M, E) f32
    enc = enc_ref[...].reshape(B * T, E)      # (N, E) f32

    def layernorm(pre, g_ref, b_ref):
        # One-pass statistics: var = E[x^2] - mean^2 (population variance, as reference).
        mean = jnp.mean(pre, axis=-1, keepdims=True)
        mean_sq = jnp.mean(pre * pre, axis=-1, keepdims=True)
        var = mean_sq - mean * mean
        y = (pre - mean) * lax.rsqrt(var + EPS)
        return g_ref[...] * y + b_ref[...]

    def split_heads(a):
        # (rows, E) f32 -> (H, rows, Dh) bf16 via static lane slices (known-good lowering).
        return jnp.stack(
            [a[:, h * Dh:(h + 1) * Dh] for h in range(H)], axis=0
        ).astype(jnp.bfloat16)

    def attention(q, k, v, bias):
        # q: (M, E) f32 already scaled by 1/sqrt(Dh); k, v: (N, E) f32.
        # bias: (M, N) additive, block-diagonal over batch (cross-batch entries = -1e9),
        # so folding batch into rows keeps batches independent.
        qh, kh, vh = split_heads(q), split_heads(k), split_heads(v)
        scores = lax.dot_general(
            qh, kh, (((2,), (2,)), ((0,), (0,))),
            preferred_element_type=jnp.float32)               # (H, M, N) f32
        scores = scores + bias[None, :, :]
        m = jnp.max(scores, axis=-1, keepdims=True)
        p = jnp.exp(scores - m)                               # un-normalized probs
        denom = jnp.sum(p, axis=-1, keepdims=True)
        ctx = lax.dot_general(
            p.astype(jnp.bfloat16), vh, (((2,), (1,)), ((0,), (0,))),
            preferred_element_type=jnp.float32)               # (H, M, Dh)
        # Deferred softmax normalization: scale M*Dh elements on the EUP slot.
        ctx = ctx * pl.reciprocal(denom, approx=True)
        return jnp.concatenate([ctx[h] for h in range(H)], axis=-1)   # (M, E) f32

    # ---- block 1: masked self-attention + double residual + LayerNorm ---------------
    qkv = jnp.dot(x.astype(jnp.bfloat16), wqkv_s_ref[...],
                  preferred_element_type=jnp.float32) + bqkv_s_ref[...]     # (M, 3E)
    q = qkv[:, :E] * inv_sqrt_dk
    k = qkv[:, E:2 * E]
    v = qkv[:, 2 * E:]
    attn = attention(q, k, v, self_bias_ref[...])
    attn = jnp.dot(attn.astype(jnp.bfloat16), wo_s_ref[...],
                   preferred_element_type=jnp.float32) + bo_s_ref[...]
    # Reference residual quirk: norm1(x + (x + attn)) == norm1(2x + attn).
    x1 = layernorm(2.0 * x + attn, g1_ref, n1b_ref)

    # ---- block 2: cross-attention + double residual + LayerNorm ---------------------
    qc = (jnp.dot(x1.astype(jnp.bfloat16), wq_c_ref[...],
                  preferred_element_type=jnp.float32) + bq_c_ref[...]) * inv_sqrt_dk
    kv = jnp.dot(enc.astype(jnp.bfloat16), wkv_c_ref[...],
                 preferred_element_type=jnp.float32) + bkv_c_ref[...]       # (N, 2E)
    kc = kv[:, :E]
    vc = kv[:, E:]
    attn2 = attention(qc, kc, vc, cross_bias_ref[...])
    attn2 = jnp.dot(attn2.astype(jnp.bfloat16), wo_c_ref[...],
                    preferred_element_type=jnp.float32) + bo_c_ref[...]
    x2 = layernorm(2.0 * x1 + attn2, g2_ref, n2b_ref)

    # ---- block 3: position-wise FFN + residual + LayerNorm --------------------------
    h1 = jnp.dot(x2.astype(jnp.bfloat16), w1_ref[...],
                 preferred_element_type=jnp.float32) + fb1_ref[...]
    h1 = jnp.maximum(h1, 0.0)
    ff = jnp.dot(h1.astype(jnp.bfloat16), w2_ref[...],
                 preferred_element_type=jnp.float32) + fb2_ref[...]
    x3 = layernorm(x2 + ff, g3_ref, n3b_ref)

    o_ref[...] = x3.reshape(B, S, E)


# ----------------------------------------------------------------------------- wrapper

def block_diag_bias(mask, batch):
    """(Sq, Sk) {1.0 keep, 0.0 drop} -> (B*Sq, B*Sk) additive bias {0, -1e9}.

    Off-diagonal batch blocks are fully masked so batches stay independent once
    batch is folded into the attention row/key axes.
    """
    sq, sk = mask.shape
    eye = jnp.eye(batch, dtype=jnp.float32)
    keep = jnp.einsum("ab,qk->aqbk", eye, mask.astype(jnp.float32))
    keep = keep.reshape(batch * sq, batch * sk)
    return jnp.where(keep > 0.0, 0.0, NEG_INF).astype(jnp.float32)


def pack_params(params):
    """Concatenate fused projection weights and cast matmul operands to bf16 once."""
    bf = lambda a: a.astype(jnp.bfloat16)
    sa, ca = params["self_attn"], params["cross_attn"]
    return dict(
        wqkv_s=bf(jnp.concatenate([sa["wq"], sa["wk"], sa["wv"]], axis=1)),   # (E, 3E)
        bqkv_s=jnp.concatenate([sa["bq"], sa["bk"], sa["bv"]], axis=1),       # (1, 3E)
        wo_s=bf(sa["wo"]), bo_s=sa["bo"],
        wq_c=bf(ca["wq"]), bq_c=ca["bq"],
        wkv_c=bf(jnp.concatenate([ca["wk"], ca["wv"]], axis=1)),              # (E, 2E)
        bkv_c=jnp.concatenate([ca["bk"], ca["bv"]], axis=1),                  # (1, 2E)
        wo_c=bf(ca["wo"]), bo_c=ca["bo"],
        ffn_w1=bf(params["ffn_w1"]), ffn_b1=params["ffn_b1"],
        ffn_w2=bf(params["ffn_w2"]), ffn_b2=params["ffn_b2"],
    )


def decoder_layer_forward(x, encoder_output, src_tgt_mask, tgt_mask, params, head_count):
    """x: (B, S, E) f32; encoder_output: (B, T, E) f32; masks: {1 keep, 0 drop}."""
    B, S, E = x.shape
    p = pack_params(params)
    self_bias = block_diag_bias(tgt_mask, B)        # (B*S, B*S)
    cross_bias = block_diag_bias(src_tgt_mask, B)   # (B*S, B*T)

    kernel = functools.partial(decoder_layer_kernel, batch=B, head_count=head_count)
    # No grid: every operand fits VMEM at these shapes, so the whole layer runs as a
    # single fused invocation (full-array blocks, no pipelining overhead).
    return pl.pallas_call(
        kernel,
        out_shape=jax.ShapeDtypeStruct((B, S, E), jnp.float32),
    )(x, encoder_output, self_bias, cross_bias,
      p["wqkv_s"], p["bqkv_s"], p["wo_s"], p["bo_s"],
      p["wq_c"], p["bq_c"], p["wkv_c"], p["bkv_c"], p["wo_c"], p["bo_c"],
      p["ffn_w1"], p["ffn_b1"], p["ffn_w2"], p["ffn_b2"],
      params["norm1_g"], params["norm1_b"],
      params["norm2_g"], params["norm2_b"],
      params["norm3_g"], params["norm3_b"])


# ----------------------------------------------------------------------------- params

def init_decoder_layer_params(key, embedding_dim, ffn_hidden_dim):
    E, FH = embedding_dim, ffn_hidden_dim
    n_rand = 8 + 8 + 4          # self-attn (8) + cross-attn (8) + ffn (4) random tensors
    key_it = iter(jax.random.split(key, n_rand))

    def nrm(shape, scale=0.02):
        return (scale * jax.random.normal(next(key_it), shape)).astype(jnp.float32)

    def mha_p():
        return {"wq": nrm((E, E)), "bq": nrm((1, E)),
                "wk": nrm((E, E)), "bk": nrm((1, E)),
                "wv": nrm((E, E)), "bv": nrm((1, E)),
                "wo": nrm((E, E)), "bo": nrm((1, E))}

    return {
        "self_attn": mha_p(),
        "cross_attn": mha_p(),
        "norm1_g": jnp.ones((1, E), jnp.float32), "norm1_b": jnp.zeros((1, E), jnp.float32),
        "norm2_g": jnp.ones((1, E), jnp.float32), "norm2_b": jnp.zeros((1, E), jnp.float32),
        "norm3_g": jnp.ones((1, E), jnp.float32), "norm3_b": jnp.zeros((1, E), jnp.float32),
        "ffn_w1": nrm((E, FH)), "ffn_b1": nrm((1, FH)),
        "ffn_w2": nrm((FH, E)), "ffn_b2": nrm((1, E)),
    }


# ----------------------------------------------------------------------------- main

if __name__ == "__main__":
    # small synthetic config (E multiple of 128 keeps outputs lane-dense)
    embedding_dim = 128
    head_count = 4           # head_dim = 32
    ffn_hidden_dim = 256
    seq_len = 8              # decoder sequence length
    enc_len = 8              # encoder output sequence length
    batch = 2

    key = jax.random.PRNGKey(0)
    k_par, k_x, k_enc = jax.random.split(key, 3)

    params = init_decoder_layer_params(k_par, embedding_dim, ffn_hidden_dim)

    x = jax.random.normal(k_x, (batch, seq_len, embedding_dim), dtype=jnp.float32)
    encoder_output = jax.random.normal(k_enc, (batch, enc_len, embedding_dim),
                                       dtype=jnp.float32)

    # causal target mask (tril) and all-ones source/target mask, {1 keep, 0 drop}
    tgt_mask = jnp.tril(jnp.ones((seq_len, seq_len), jnp.float32))
    src_tgt_mask = jnp.ones((seq_len, enc_len), jnp.float32)

    out = decoder_layer_forward(x, encoder_output, src_tgt_mask, tgt_mask,
                                params, head_count)
    out = jax.block_until_ready(out)
    assert out.shape == (batch, seq_len, embedding_dim)
    assert bool(jnp.all(jnp.isfinite(out)))
    print("KERNEL_OK")
</pallas_src>

<mosaic_0001>
module attributes {stable_mosaic.version = 11 : i64} {
  func.func @decoder_layer_kernel(%arg0: memref<2x8x128xf32, #tpu.memory_space<vmem>>, %arg1: memref<2x8x128xf32, #tpu.memory_space<vmem>>, %arg2: memref<16x16xf32, #tpu.memory_space<vmem>>, %arg3: memref<16x16xf32, #tpu.memory_space<vmem>>, %arg4: memref<128x384xbf16, #tpu.memory_space<vmem>>, %arg5: memref<1x384xf32, #tpu.memory_space<vmem>>, %arg6: memref<128x128xbf16, #tpu.memory_space<vmem>>, %arg7: memref<1x128xf32, #tpu.memory_space<vmem>>, %arg8: memref<128x128xbf16, #tpu.memory_space<vmem>>, %arg9: memref<1x128xf32, #tpu.memory_space<vmem>>, %arg10: memref<128x256xbf16, #tpu.memory_space<vmem>>, %arg11: memref<1x256xf32, #tpu.memory_space<vmem>>, %arg12: memref<128x128xbf16, #tpu.memory_space<vmem>>, %arg13: memref<1x128xf32, #tpu.memory_space<vmem>>, %arg14: memref<128x256xbf16, #tpu.memory_space<vmem>>, %arg15: memref<1x256xf32, #tpu.memory_space<vmem>>, %arg16: memref<256x128xbf16, #tpu.memory_space<vmem>>, %arg17: memref<1x128xf32, #tpu.memory_space<vmem>>, %arg18: memref<1x128xf32, #tpu.memory_space<vmem>>, %arg19: memref<1x128xf32, #tpu.memory_space<vmem>>, %arg20: memref<1x128xf32, #tpu.memory_space<vmem>>, %arg21: memref<1x128xf32, #tpu.memory_space<vmem>>, %arg22: memref<1x128xf32, #tpu.memory_space<vmem>>, %arg23: memref<1x128xf32, #tpu.memory_space<vmem>>, %arg24: memref<2x8x128xf32, #tpu.memory_space<vmem>>) attributes {dimension_semantics = [], scalar_prefetch = 0 : i64, scratch_operands = 0 : i64, tpu.core_type = #tpu.core_type<tc>} {
    %c0 = arith.constant 0 : index
    %c0_0 = arith.constant 0 : index
    %c0_1 = arith.constant 0 : index
    %0 = vector.load %arg0[%c0, %c0_0, %c0_1] : memref<2x8x128xf32, #tpu.memory_space<vmem>>, vector<2x8x128xf32>
    %1 = vector.shape_cast %0 : vector<2x8x128xf32> to vector<16x128xf32>
    %c0_2 = arith.constant 0 : index
    %c0_3 = arith.constant 0 : index
    %c0_4 = arith.constant 0 : index
    %2 = vector.load %arg1[%c0_2, %c0_3, %c0_4] : memref<2x8x128xf32, #tpu.memory_space<vmem>>, vector<2x8x128xf32>
    %3 = vector.shape_cast %2 : vector<2x8x128xf32> to vector<16x128xf32>
    %4 = arith.truncf %1 : vector<16x128xf32> to vector<16x128xbf16>
    %c0_5 = arith.constant 0 : index
    %c0_6 = arith.constant 0 : index
    %5 = vector.load %arg4[%c0_5, %c0_6] : memref<128x384xbf16, #tpu.memory_space<vmem>>, vector<128x384xbf16>
    %cst = arith.constant dense<0.000000e+00> : vector<16x384xf32>
    %6 = tpu.matmul %4, %5, %cst {dimension_numbers = #tpu.dot_dimension_numbers<[1], [0], [0], [1], [0, 0, 1, 1], [], []>} : vector<16x128xbf16>, vector<128x384xbf16>, vector<16x384xf32> -> vector<16x384xf32>
    %c0_7 = arith.constant 0 : index
    %c0_8 = arith.constant 0 : index
    %7 = vector.load %arg5[%c0_7, %c0_8] : memref<1x384xf32, #tpu.memory_space<vmem>>, vector<1x384xf32>
    %8 = vector.broadcast %7 : vector<1x384xf32> to vector<16x384xf32>
    %9 = arith.addf %6, %8 : vector<16x384xf32>
    %10 = vector.extract_strided_slice %9 {offsets = [0, 0], sizes = [16, 128], strides = [1, 1]} : vector<16x384xf32> to vector<16x128xf32>
    %cst_9 = arith.constant 0.176776692 : f32
    %11 = vector.broadcast %cst_9 : f32 to vector<16x128xf32>
    %12 = arith.mulf %10, %11 : vector<16x128xf32>
    %13 = vector.extract_strided_slice %9 {offsets = [0, 128], sizes = [16, 128], strides = [1, 1]} : vector<16x384xf32> to vector<16x128xf32>
    %14 = vector.extract_strided_slice %9 {offsets = [0, 256], sizes = [16, 128], strides = [1, 1]} : vector<16x384xf32> to vector<16x128xf32>
    %c0_10 = arith.constant 0 : index
    %c0_11 = arith.constant 0 : index
    %15 = vector.load %arg2[%c0_10, %c0_11] : memref<16x16xf32, #tpu.memory_space<vmem>>, vector<16x16xf32>
    %16 = vector.extract_strided_slice %12 {offsets = [0, 0], sizes = [16, 32], strides = [1, 1]} : vector<16x128xf32> to vector<16x32xf32>
    %17 = vector.extract_strided_slice %12 {offsets = [0, 32], sizes = [16, 32], strides = [1, 1]} : vector<16x128xf32> to vector<16x32xf32>
    %18 = vector.extract_strided_slice %12 {offsets = [0, 64], sizes = [16, 32], strides = [1, 1]} : vector<16x128xf32> to vector<16x32xf32>
    %19 = vector.extract_strided_slice %12 {offsets = [0, 96], sizes = [16, 32], strides = [1, 1]} : vector<16x128xf32> to vector<16x32xf32>
    %20 = vector.shape_cast %16 : vector<16x32xf32> to vector<1x16x32xf32>
    %21 = vector.shape_cast %17 : vector<16x32xf32> to vector<1x16x32xf32>
    %22 = vector.shape_cast %18 : vector<16x32xf32> to vector<1x16x32xf32>
    %23 = vector.shape_cast %19 : vector<16x32xf32> to vector<1x16x32xf32>
    %24 = tpu.concatenate %20, %21, %22, %23 in 0 : vector<1x16x32xf32>, vector<1x16x32xf32>, vector<1x16x32xf32>, vector<1x16x32xf32> -> vector<4x16x32xf32>
    %25 = arith.truncf %24 : vector<4x16x32xf32> to vector<4x16x32xbf16>
    %26 = vector.extract_strided_slice %13 {offsets = [0, 0], sizes = [16, 32], strides = [1, 1]} : vector<16x128xf32> to vector<16x32xf32>
    %27 = vector.extract_strided_slice %13 {offsets = [0, 32], sizes = [16, 32], strides = [1, 1]} : vector<16x128xf32> to vector<16x32xf32>
    %28 = vector.extract_strided_slice %13 {offsets = [0, 64], sizes = [16, 32], strides = [1, 1]} : vector<16x128xf32> to vector<16x32xf32>
    %29 = vector.extract_strided_slice %13 {offsets = [0, 96], sizes = [16, 32], strides = [1, 1]} : vector<16x128xf32> to vector<16x32xf32>
    %30 = vector.shape_cast %26 : vector<16x32xf32> to vector<1x16x32xf32>
    %31 = vector.shape_cast %27 : vector<16x32xf32> to vector<1x16x32xf32>
    %32 = vector.shape_cast %28 : vector<16x32xf32> to vector<1x16x32xf32>
    %33 = vector.shape_cast %29 : vector<16x32xf32> to vector<1x16x32xf32>
    %34 = tpu.concatenate %30, %31, %32, %33 in 0 : vector<1x16x32xf32>, vector<1x16x32xf32>, vector<1x16x32xf32>, vector<1x16x32xf32> -> vector<4x16x32xf32>
    %35 = arith.truncf %34 : vector<4x16x32xf32> to vector<4x16x32xbf16>
    %36 = vector.extract_strided_slice %14 {offsets = [0, 0], sizes = [16, 32], strides = [1, 1]} : vector<16x128xf32> to vector<16x32xf32>
    %37 = vector.extract_strided_slice %14 {offsets = [0, 32], sizes = [16, 32], strides = [1, 1]} : vector<16x128xf32> to vector<16x32xf32>
    %38 = vector.extract_strided_slice %14 {offsets = [0, 64], sizes = [16, 32], strides = [1, 1]} : vector<16x128xf32> to vector<16x32xf32>
    %39 = vector.extract_strided_slice %14 {offsets = [0, 96], sizes = [16, 32], strides = [1, 1]} : vector<16x128xf32> to vector<16x32xf32>
    %40 = vector.shape_cast %36 : vector<16x32xf32> to vector<1x16x32xf32>
    %41 = vector.shape_cast %37 : vector<16x32xf32> to vector<1x16x32xf32>
    %42 = vector.shape_cast %38 : vector<16x32xf32> to vector<1x16x32xf32>
    %43 = vector.shape_cast %39 : vector<16x32xf32> to vector<1x16x32xf32>
    %44 = tpu.concatenate %40, %41, %42, %43 in 0 : vector<1x16x32xf32>, vector<1x16x32xf32>, vector<1x16x32xf32>, vector<1x16x32xf32> -> vector<4x16x32xf32>
    %45 = arith.truncf %44 : vector<4x16x32xf32> to vector<4x16x32xbf16>
    %cst_12 = arith.constant dense<0.000000e+00> : vector<4x16x16xf32>
    %46 = tpu.matmul %25, %35, %cst_12 {dimension_numbers = #tpu.dot_dimension_numbers<[2], [2], [1], [1], [0, 0, 0, 1, 1, 1], [0], [0]>} : vector<4x16x32xbf16>, vector<4x16x32xbf16>, vector<4x16x16xf32> -> vector<4x16x16xf32>
    %47 = vector.shape_cast %15 : vector<16x16xf32> to vector<1x16x16xf32>
    %48 = vector.broadcast %47 : vector<1x16x16xf32> to vector<4x16x16xf32>
    %49 = arith.addf %46, %48 : vector<4x16x16xf32>
    %cst_13 = arith.constant dense<0xFF800000> : vector<4x16xf32>
    %50 = vector.multi_reduction <maximumf>, %49, %cst_13 [2] : vector<4x16x16xf32> to vector<4x16xf32>
    %51 = vector.shape_cast %50 : vector<4x16xf32> to vector<4x16x1xf32>
    %52 = vector.broadcast %51 : vector<4x16x1xf32> to vector<4x16x16xf32>
    %53 = arith.subf %49, %52 : vector<4x16x16xf32>
    %54 = math.exp %53 : vector<4x16x16xf32>
    %cst_14 = arith.constant dense<0.000000e+00> : vector<4x16xf32>
    %55 = vector.multi_reduction <add>, %54, %cst_14 [2] : vector<4x16x16xf32> to vector<4x16xf32>
    %56 = vector.shape_cast %55 : vector<4x16xf32> to vector<4x16x1xf32>
    %57 = arith.truncf %54 : vector<4x16x16xf32> to vector<4x16x16xbf16>
    %cst_15 = arith.constant dense<0.000000e+00> : vector<4x16x32xf32>
    %58 = tpu.matmul %57, %45, %cst_15 {dimension_numbers = #tpu.dot_dimension_numbers<[2], [1], [1], [2], [0, 0, 0, 1, 1, 2], [0], [0]>} : vector<4x16x16xbf16>, vector<4x16x32xbf16>, vector<4x16x32xf32> -> vector<4x16x32xf32>
    %59 = tpu.reciprocal %56 {approx = true} : vector<4x16x1xf32> -> vector<4x16x1xf32>
    %60 = vector.broadcast %59 : vector<4x16x1xf32> to vector<4x16x32xf32>
    %61 = arith.mulf %58, %60 : vector<4x16x32xf32>
    %62 = vector.extract_strided_slice %61 {offsets = [0, 0, 0], sizes = [1, 16, 32], strides = [1, 1, 1]} : vector<4x16x32xf32> to vector<1x16x32xf32>
    %63 = vector.shape_cast %62 : vector<1x16x32xf32> to vector<16x32xf32>
    %64 = vector.extract_strided_slice %61 {offsets = [1, 0, 0], sizes = [1, 16, 32], strides = [1, 1, 1]} : vector<4x16x32xf32> to vector<1x16x32xf32>
    %65 = vector.shape_cast %64 : vector<1x16x32xf32> to vector<16x32xf32>
    %66 = vector.extract_strided_slice %61 {offsets = [2, 0, 0], sizes = [1, 16, 32], strides = [1, 1, 1]} : vector<4x16x32xf32> to vector<1x16x32xf32>
    %67 = vector.shape_cast %66 : vector<1x16x32xf32> to vector<16x32xf32>
    %68 = vector.extract_strided_slice %61 {offsets = [3, 0, 0], sizes = [1, 16, 32], strides = [1, 1, 1]} : vector<4x16x32xf32> to vector<1x16x32xf32>
    %69 = vector.shape_cast %68 : vector<1x16x32xf32> to vector<16x32xf32>
    %70 = tpu.concatenate %63, %65, %67, %69 in 1 : vector<16x32xf32>, vector<16x32xf32>, vector<16x32xf32>, vector<16x32xf32> -> vector<16x128xf32>
    %71 = arith.truncf %70 : vector<16x128xf32> to vector<16x128xbf16>
    %c0_16 = arith.constant 0 : index
    %c0_17 = arith.constant 0 : index
    %72 = vector.load %arg6[%c0_16, %c0_17] : memref<128x128xbf16, #tpu.memory_space<vmem>>, vector<128x128xbf16>
    %cst_18 = arith.constant dense<0.000000e+00> : vector<16x128xf32>
    %73 = tpu.matmul %71, %72, %cst_18 {dimension_numbers = #tpu.dot_dimension_numbers<[1], [0], [0], [1], [0, 0, 1, 1], [], []>} : vector<16x128xbf16>, vector<128x128xbf16>, vector<16x128xf32> -> vector<16x128xf32>
    %c0_19 = arith.constant 0 : index
    %c0_20 = arith.constant 0 : index
    %74 = vector.load %arg7[%c0_19, %c0_20] : memref<1x128xf32, #tpu.memory_space<vmem>>, vector<1x128xf32>
    %75 = vector.broadcast %74 : vector<1x128xf32> to vector<16x128xf32>
    %76 = arith.addf %73, %75 : vector<16x128xf32>
    %cst_21 = arith.constant 2.000000e+00 : f32
    %77 = vector.broadcast %cst_21 : f32 to vector<16x128xf32>
    %78 = arith.mulf %77, %1 : vector<16x128xf32>
    %79 = arith.addf %78, %76 : vector<16x128xf32>
    %cst_22 = arith.constant dense<0.000000e+00> : vector<16xf32>
    %80 = vector.multi_reduction <add>, %79, %cst_22 [1] : vector<16x128xf32> to vector<16xf32>
    %81 = vector.shape_cast %80 : vector<16xf32> to vector<16x1xf32>
    %cst_23 = arith.constant 1.280000e+02 : f32
    %82 = vector.broadcast %cst_23 : f32 to vector<16x1xf32>
    %83 = arith.divf %81, %82 : vector<16x1xf32>
    %84 = arith.mulf %79, %79 : vector<16x128xf32>
    %cst_24 = arith.constant dense<0.000000e+00> : vector<16xf32>
    %85 = vector.multi_reduction <add>, %84, %cst_24 [1] : vector<16x128xf32> to vector<16xf32>
    %86 = vector.shape_cast %85 : vector<16xf32> to vector<16x1xf32>
    %cst_25 = arith.constant 1.280000e+02 : f32
    %87 = vector.broadcast %cst_25 : f32 to vector<16x1xf32>
    %88 = arith.divf %86, %87 : vector<16x1xf32>
    %89 = arith.mulf %83, %83 : vector<16x1xf32>
    %90 = arith.subf %88, %89 : vector<16x1xf32>
    %91 = vector.broadcast %83 : vector<16x1xf32> to vector<16x128xf32>
    %92 = arith.subf %79, %91 : vector<16x128xf32>
    %cst_26 = arith.constant 9.99999974E-6 : f32
    %93 = vector.broadcast %cst_26 : f32 to vector<16x1xf32>
    %94 = arith.addf %90, %93 : vector<16x1xf32>
    %95 = math.rsqrt %94 : vector<16x1xf32>
    %96 = vector.broadcast %95 : vector<16x1xf32> to vector<16x128xf32>
    %97 = arith.mulf %92, %96 : vector<16x128xf32>
    %c0_27 = arith.constant 0 : index
    %c0_28 = arith.constant 0 : index
    %98 = vector.load %arg18[%c0_27, %c0_28] : memref<1x128xf32, #tpu.memory_space<vmem>>, vector<1x128xf32>
    %99 = vector.broadcast %98 : vector<1x128xf32> to vector<16x128xf32>
    %100 = arith.mulf %99, %97 : vector<16x128xf32>
    %c0_29 = arith.constant 0 : index
    %c0_30 = arith.constant 0 : index
    %101 = vector.load %arg19[%c0_29, %c0_30] : memref<1x128xf32, #tpu.memory_space<vmem>>, vector<1x128xf32>
    %102 = vector.broadcast %101 : vector<1x128xf32> to vector<16x128xf32>
    %103 = arith.addf %100, %102 : vector<16x128xf32>
    %104 = arith.truncf %103 : vector<16x128xf32> to vector<16x128xbf16>
    %c0_31 = arith.constant 0 : index
    %c0_32 = arith.constant 0 : index
    %105 = vector.load %arg8[%c0_31, %c0_32] : memref<128x128xbf16, #tpu.memory_space<vmem>>, vector<128x128xbf16>
    %cst_33 = arith.constant dense<0.000000e+00> : vector<16x128xf32>
    %106 = tpu.matmul %104, %105, %cst_33 {dimension_numbers = #tpu.dot_dimension_numbers<[1], [0], [0], [1], [0, 0, 1, 1], [], []>} : vector<16x128xbf16>, vector<128x128xbf16>, vector<16x128xf32> -> vector<16x128xf32>
    %c0_34 = arith.constant 0 : index
    %c0_35 = arith.constant 0 : index
    %107 = vector.load %arg9[%c0_34, %c0_35] : memref<1x128xf32, #tpu.memory_space<vmem>>, vector<1x128xf32>
    %108 = vector.broadcast %107 : vector<1x128xf32> to vector<16x128xf32>
    %109 = arith.addf %106, %108 : vector<16x128xf32>
    %cst_36 = arith.constant 0.176776692 : f32
    %110 = vector.broadcast %cst_36 : f32 to vector<16x128xf32>
    %111 = arith.mulf %109, %110 : vector<16x128xf32>
    %112 = arith.truncf %3 : vector<16x128xf32> to vector<16x128xbf16>
    %c0_37 = arith.constant 0 : index
    %c0_38 = arith.constant 0 : index
    %113 = vector.load %arg10[%c0_37, %c0_38] : memref<128x256xbf16, #tpu.memory_space<vmem>>, vector<128x256xbf16>
    %cst_39 = arith.constant dense<0.000000e+00> : vector<16x256xf32>
    %114 = tpu.matmul %112, %113, %cst_39 {dimension_numbers = #tpu.dot_dimension_numbers<[1], [0], [0], [1], [0, 0, 1, 1], [], []>} : vector<16x128xbf16>, vector<128x256xbf16>, vector<16x256xf32> -> vector<16x256xf32>
    %c0_40 = arith.constant 0 : index
    %c0_41 = arith.constant 0 : index
    %115 = vector.load %arg11[%c0_40, %c0_41] : memref<1x256xf32, #tpu.memory_space<vmem>>, vector<1x256xf32>
    %116 = vector.broadcast %115 : vector<1x256xf32> to vector<16x256xf32>
    %117 = arith.addf %114, %116 : vector<16x256xf32>
    %118 = vector.extract_strided_slice %117 {offsets = [0, 0], sizes = [16, 128], strides = [1, 1]} : vector<16x256xf32> to vector<16x128xf32>
    %119 = vector.extract_strided_slice %117 {offsets = [0, 128], sizes = [16, 128], strides = [1, 1]} : vector<16x256xf32> to vector<16x128xf32>
    %c0_42 = arith.constant 0 : index
    %c0_43 = arith.constant 0 : index
    %120 = vector.load %arg3[%c0_42, %c0_43] : memref<16x16xf32, #tpu.memory_space<vmem>>, vector<16x16xf32>
    %121 = vector.extract_strided_slice %111 {offsets = [0, 0], sizes = [16, 32], strides = [1, 1]} : vector<16x128xf32> to vector<16x32xf32>
    %122 = vector.extract_strided_slice %111 {offsets = [0, 32], sizes = [16, 32], strides = [1, 1]} : vector<16x128xf32> to vector<16x32xf32>
    %123 = vector.extract_strided_slice %111 {offsets = [0, 64], sizes = [16, 32], strides = [1, 1]} : vector<16x128xf32> to vector<16x32xf32>
    %124 = vector.extract_strided_slice %111 {offsets = [0, 96], sizes = [16, 32], strides = [1, 1]} : vector<16x128xf32> to vector<16x32xf32>
    %125 = vector.shape_cast %121 : vector<16x32xf32> to vector<1x16x32xf32>
    %126 = vector.shape_cast %122 : vector<16x32xf32> to vector<1x16x32xf32>
    %127 = vector.shape_cast %123 : vector<16x32xf32> to vector<1x16x32xf32>
    %128 = vector.shape_cast %124 : vector<16x32xf32> to vector<1x16x32xf32>
    %129 = tpu.concatenate %125, %126, %127, %128 in 0 : vector<1x16x32xf32>, vector<1x16x32xf32>, vector<1x16x32xf32>, vector<1x16x32xf32> -> vector<4x16x32xf32>
    %130 = arith.truncf %129 : vector<4x16x32xf32> to vector<4x16x32xbf16>
    %131 = vector.extract_strided_slice %118 {offsets = [0, 0], sizes = [16, 32], strides = [1, 1]} : vector<16x128xf32> to vector<16x32xf32>
    %132 = vector.extract_strided_slice %118 {offsets = [0, 32], sizes = [16, 32], strides = [1, 1]} : vector<16x128xf32> to vector<16x32xf32>
    %133 = vector.extract_strided_slice %118 {offsets = [0, 64], sizes = [16, 32], strides = [1, 1]} : vector<16x128xf32> to vector<16x32xf32>
    %134 = vector.extract_strided_slice %118 {offsets = [0, 96], sizes = [16, 32], strides = [1, 1]} : vector<16x128xf32> to vector<16x32xf32>
    %135 = vector.shape_cast %131 : vector<16x32xf32> to vector<1x16x32xf32>
    %136 = vector.shape_cast %132 : vector<16x32xf32> to vector<1x16x32xf32>
    %137 = vector.shape_cast %133 : vector<16x32xf32> to vector<1x16x32xf32>
    %138 = vector.shape_cast %134 : vector<16x32xf32> to vector<1x16x32xf32>
    %139 = tpu.concatenate %135, %136, %137, %138 in 0 : vector<1x16x32xf32>, vector<1x16x32xf32>, vector<1x16x32xf32>, vector<1x16x32xf32> -> vector<4x16x32xf32>
    %140 = arith.truncf %139 : vector<4x16x32xf32> to vector<4x16x32xbf16>
    %141 = vector.extract_strided_slice %119 {offsets = [0, 0], sizes = [16, 32], strides = [1, 1]} : vector<16x128xf32> to vector<16x32xf32>
    %142 = vector.extract_strided_slice %119 {offsets = [0, 32], sizes = [16, 32], strides = [1, 1]} : vector<16x128xf32> to vector<16x32xf32>
    %143 = vector.extract_strided_slice %119 {offsets = [0, 64], sizes = [16, 32], strides = [1, 1]} : vector<16x128xf32> to vector<16x32xf32>
    %144 = vector.extract_strided_slice %119 {offsets = [0, 96], sizes = [16, 32], strides = [1, 1]} : vector<16x128xf32> to vector<16x32xf32>
    %145 = vector.shape_cast %141 : vector<16x32xf32> to vector<1x16x32xf32>
    %146 = vector.shape_cast %142 : vector<16x32xf32> to vector<1x16x32xf32>
    %147 = vector.shape_cast %143 : vector<16x32xf32> to vector<1x16x32xf32>
    %148 = vector.shape_cast %144 : vector<16x32xf32> to vector<1x16x32xf32>
    %149 = tpu.concatenate %145, %146, %147, %148 in 0 : vector<1x16x32xf32>, vector<1x16x32xf32>, vector<1x16x32xf32>, vector<1x16x32xf32> -> vector<4x16x32xf32>
    %150 = arith.truncf %149 : vector<4x16x32xf32> to vector<4x16x32xbf16>
    %cst_44 = arith.constant dense<0.000000e+00> : vector<4x16x16xf32>
    %151 = tpu.matmul %130, %140, %cst_44 {dimension_numbers = #tpu.dot_dimension_numbers<[2], [2], [1], [1], [0, 0, 0, 1, 1, 1], [0], [0]>} : vector<4x16x32xbf16>, vector<4x16x32xbf16>, vector<4x16x16xf32> -> vector<4x16x16xf32>
    %152 = vector.shape_cast %120 : vector<16x16xf32> to vector<1x16x16xf32>
    %153 = vector.broadcast %152 : vector<1x16x16xf32> to vector<4x16x16xf32>
    %154 = arith.addf %151, %153 : vector<4x16x16xf32>
    %cst_45 = arith.constant dense<0xFF800000> : vector<4x16xf32>
    %155 = vector.multi_reduction <maximumf>, %154, %cst_45 [2] : vector<4x16x16xf32> to vector<4x16xf32>
    %156 = vector.shape_cast %155 : vector<4x16xf32> to vector<4x16x1xf32>
    %157 = vector.broadcast %156 : vector<4x16x1xf32> to vector<4x16x16xf32>
    %158 = arith.subf %154, %157 : vector<4x16x16xf32>
    %159 = math.exp %158 : vector<4x16x16xf32>
    %cst_46 = arith.constant dense<0.000000e+00> : vector<4x16xf32>
    %160 = vector.multi_reduction <add>, %159, %cst_46 [2] : vector<4x16x16xf32> to vector<4x16xf32>
    %161 = vector.shape_cast %160 : vector<4x16xf32> to vector<4x16x1xf32>
    %162 = arith.truncf %159 : vector<4x16x16xf32> to vector<4x16x16xbf16>
    %cst_47 = arith.constant dense<0.000000e+00> : vector<4x16x32xf32>
    %163 = tpu.matmul %162, %150, %cst_47 {dimension_numbers = #tpu.dot_dimension_numbers<[2], [1], [1], [2], [0, 0, 0, 1, 1, 2], [0], [0]>} : vector<4x16x16xbf16>, vector<4x16x32xbf16>, vector<4x16x32xf32> -> vector<4x16x32xf32>
    %164 = tpu.reciprocal %161 {approx = true} : vector<4x16x1xf32> -> vector<4x16x1xf32>
    %165 = vector.broadcast %164 : vector<4x16x1xf32> to vector<4x16x32xf32>
    %166 = arith.mulf %163, %165 : vector<4x16x32xf32>
    %167 = vector.extract_strided_slice %166 {offsets = [0, 0, 0], sizes = [1, 16, 32], strides = [1, 1, 1]} : vector<4x16x32xf32> to vector<1x16x32xf32>
    %168 = vector.shape_cast %167 : vector<1x16x32xf32> to vector<16x32xf32>
    %169 = vector.extract_strided_slice %166 {offsets = [1, 0, 0], sizes = [1, 16, 32], strides = [1, 1, 1]} : vector<4x16x32xf32> to vector<1x16x32xf32>
    %170 = vector.shape_cast %169 : vector<1x16x32xf32> to vector<16x32xf32>
    %171 = vector.extract_strided_slice %166 {offsets = [2, 0, 0], sizes = [1, 16, 32], strides = [1, 1, 1]} : vector<4x16x32xf32> to vector<1x16x32xf32>
    %172 = vector.shape_cast %171 : vector<1x16x32xf32> to vector<16x32xf32>
    %173 = vector.extract_strided_slice %166 {offsets = [3, 0, 0], sizes = [1, 16, 32], strides = [1, 1, 1]} : vector<4x16x32xf32> to vector<1x16x32xf32>
    %174 = vector.shape_cast %173 : vector<1x16x32xf32> to vector<16x32xf32>
    %175 = tpu.concatenate %168, %170, %172, %174 in 1 : vector<16x32xf32>, vector<16x32xf32>, vector<16x32xf32>, vector<16x32xf32> -> vector<16x128xf32>
    %176 = arith.truncf %175 : vector<16x128xf32> to vector<16x128xbf16>
    %c0_48 = arith.constant 0 : index
    %c0_49 = arith.constant 0 : index
    %177 = vector.load %arg12[%c0_48, %c0_49] : memref<128x128xbf16, #tpu.memory_space<vmem>>, vector<128x128xbf16>
    %cst_50 = arith.constant dense<0.000000e+00> : vector<16x128xf32>
    %178 = tpu.matmul %176, %177, %cst_50 {dimension_numbers = #tpu.dot_dimension_numbers<[1], [0], [0], [1], [0, 0, 1, 1], [], []>} : vector<16x128xbf16>, vector<128x128xbf16>, vector<16x128xf32> -> vector<16x128xf32>
    %c0_51 = arith.constant 0 : index
    %c0_52 = arith.constant 0 : index
    %179 = vector.load %arg13[%c0_51, %c0_52] : memref<1x128xf32, #tpu.memory_space<vmem>>, vector<1x128xf32>
    %180 = vector.broadcast %179 : vector<1x128xf32> to vector<16x128xf32>
    %181 = arith.addf %178, %180 : vector<16x128xf32>
    %cst_53 = arith.constant 2.000000e+00 : f32
    %182 = vector.broadcast %cst_53 : f32 to vector<16x128xf32>
    %183 = arith.mulf %182, %103 : vector<16x128xf32>
    %184 = arith.addf %183, %181 : vector<16x128xf32>
    %cst_54 = arith.constant dense<0.000000e+00> : vector<16xf32>
    %185 = vector.multi_reduction <add>, %184, %cst_54 [1] : vector<16x128xf32> to vector<16xf32>
    %186 = vector.shape_cast %185 : vector<16xf32> to vector<16x1xf32>
    %cst_55 = arith.constant 1.280000e+02 : f32
    %187 = vector.broadcast %cst_55 : f32 to vector<16x1xf32>
    %188 = arith.divf %186, %187 : vector<16x1xf32>
    %189 = arith.mulf %184, %184 : vector<16x128xf32>
    %cst_56 = arith.constant dense<0.000000e+00> : vector<16xf32>
    %190 = vector.multi_reduction <add>, %189, %cst_56 [1] : vector<16x128xf32> to vector<16xf32>
    %191 = vector.shape_cast %190 : vector<16xf32> to vector<16x1xf32>
    %cst_57 = arith.constant 1.280000e+02 : f32
    %192 = vector.broadcast %cst_57 : f32 to vector<16x1xf32>
    %193 = arith.divf %191, %192 : vector<16x1xf32>
    %194 = arith.mulf %188, %188 : vector<16x1xf32>
    %195 = arith.subf %193, %194 : vector<16x1xf32>
    %196 = vector.broadcast %188 : vector<16x1xf32> to vector<16x128xf32>
    %197 = arith.subf %184, %196 : vector<16x128xf32>
    %cst_58 = arith.constant 9.99999974E-6 : f32
    %198 = vector.broadcast %cst_58 : f32 to vector<16x1xf32>
    %199 = arith.addf %195, %198 : vector<16x1xf32>
    %200 = math.rsqrt %199 : vector<16x1xf32>
    %201 = vector.broadcast %200 : vector<16x1xf32> to vector<16x128xf32>
    %202 = arith.mulf %197, %201 : vector<16x128xf32>
    %c0_59 = arith.constant 0 : index
    %c0_60 = arith.constant 0 : index
    %203 = vector.load %arg20[%c0_59, %c0_60] : memref<1x128xf32, #tpu.memory_space<vmem>>, vector<1x128xf32>
    %204 = vector.broadcast %203 : vector<1x128xf32> to vector<16x128xf32>
    %205 = arith.mulf %204, %202 : vector<16x128xf32>
    %c0_61 = arith.constant 0 : index
    %c0_62 = arith.constant 0 : index
    %206 = vector.load %arg21[%c0_61, %c0_62] : memref<1x128xf32, #tpu.memory_space<vmem>>, vector<1x128xf32>
    %207 = vector.broadcast %206 : vector<1x128xf32> to vector<16x128xf32>
    %208 = arith.addf %205, %207 : vector<16x128xf32>
    %209 = arith.truncf %208 : vector<16x128xf32> to vector<16x128xbf16>
    %c0_63 = arith.constant 0 : index
    %c0_64 = arith.constant 0 : index
    %210 = vector.load %arg14[%c0_63, %c0_64] : memref<128x256xbf16, #tpu.memory_space<vmem>>, vector<128x256xbf16>
    %cst_65 = arith.constant dense<0.000000e+00> : vector<16x256xf32>
    %211 = tpu.matmul %209, %210, %cst_65 {dimension_numbers = #tpu.dot_dimension_numbers<[1], [0], [0], [1], [0, 0, 1, 1], [], []>} : vector<16x128xbf16>, vector<128x256xbf16>, vector<16x256xf32> -> vector<16x256xf32>
    %c0_66 = arith.constant 0 : index
    %c0_67 = arith.constant 0 : index
    %212 = vector.load %arg15[%c0_66, %c0_67] : memref<1x256xf32, #tpu.memory_space<vmem>>, vector<1x256xf32>
    %213 = vector.broadcast %212 : vector<1x256xf32> to vector<16x256xf32>
    %214 = arith.addf %211, %213 : vector<16x256xf32>
    %cst_68 = arith.constant 0.000000e+00 : f32
    %215 = vector.broadcast %cst_68 : f32 to vector<16x256xf32>
    %216 = arith.maximumf %214, %215 : vector<16x256xf32>
    %217 = arith.truncf %216 : vector<16x256xf32> to vector<16x256xbf16>
    %c0_69 = arith.constant 0 : index
    %c0_70 = arith.constant 0 : index
    %218 = vector.load %arg16[%c0_69, %c0_70] : memref<256x128xbf16, #tpu.memory_space<vmem>>, vector<256x128xbf16>
    %cst_71 = arith.constant dense<0.000000e+00> : vector<16x128xf32>
    %219 = tpu.matmul %217, %218, %cst_71 {dimension_numbers = #tpu.dot_dimension_numbers<[1], [0], [0], [1], [0, 0, 1, 1], [], []>} : vector<16x256xbf16>, vector<256x128xbf16>, vector<16x128xf32> -> vector<16x128xf32>
    %c0_72 = arith.constant 0 : index
    %c0_73 = arith.constant 0 : index
    %220 = vector.load %arg17[%c0_72, %c0_73] : memref<1x128xf32, #tpu.memory_space<vmem>>, vector<1x128xf32>
    %221 = vector.broadcast %220 : vector<1x128xf32> to vector<16x128xf32>
    %222 = arith.addf %219, %221 : vector<16x128xf32>
    %223 = arith.addf %208, %222 : vector<16x128xf32>
    %cst_74 = arith.constant dense<0.000000e+00> : vector<16xf32>
    %224 = vector.multi_reduction <add>, %223, %cst_74 [1] : vector<16x128xf32> to vector<16xf32>
    %225 = vector.shape_cast %224 : vector<16xf32> to vector<16x1xf32>
    %cst_75 = arith.constant 1.280000e+02 : f32
    %226 = vector.broadcast %cst_75 : f32 to vector<16x1xf32>
    %227 = arith.divf %225, %226 : vector<16x1xf32>
    %228 = arith.mulf %223, %223 : vector<16x128xf32>
    %cst_76 = arith.constant dense<0.000000e+00> : vector<16xf32>
    %229 = vector.multi_reduction <add>, %228, %cst_76 [1] : vector<16x128xf32> to vector<16xf32>
    %230 = vector.shape_cast %229 : vector<16xf32> to vector<16x1xf32>
    %cst_77 = arith.constant 1.280000e+02 : f32
    %231 = vector.broadcast %cst_77 : f32 to vector<16x1xf32>
    %232 = arith.divf %230, %231 : vector<16x1xf32>
    %233 = arith.mulf %227, %227 : vector<16x1xf32>
    %234 = arith.subf %232, %233 : vector<16x1xf32>
    %235 = vector.broadcast %227 : vector<16x1xf32> to vector<16x128xf32>
    %236 = arith.subf %223, %235 : vector<16x128xf32>
    %cst_78 = arith.constant 9.99999974E-6 : f32
    %237 = vector.broadcast %cst_78 : f32 to vector<16x1xf32>
    %238 = arith.addf %234, %237 : vector<16x1xf32>
    %239 = math.rsqrt %238 : vector<16x1xf32>
    %240 = vector.broadcast %239 : vector<16x1xf32> to vector<16x128xf32>
    %241 = arith.mulf %236, %240 : vector<16x128xf32>
    %c0_79 = arith.constant 0 : index
    %c0_80 = arith.constant 0 : index
    %242 = vector.load %arg22[%c0_79, %c0_80] : memref<1x128xf32, #tpu.memory_space<vmem>>, vector<1x128xf32>
    %243 = vector.broadcast %242 : vector<1x128xf32> to vector<16x128xf32>
    %244 = arith.mulf %243, %241 : vector<16x128xf32>
    %c0_81 = arith.constant 0 : index
    %c0_82 = arith.constant 0 : index
    %245 = vector.load %arg23[%c0_81, %c0_82] : memref<1x128xf32, #tpu.memory_space<vmem>>, vector<1x128xf32>
    %246 = vector.broadcast %245 : vector<1x128xf32> to vector<16x128xf32>
    %247 = arith.addf %244, %246 : vector<16x128xf32>
    %248 = vector.shape_cast %247 : vector<16x128xf32> to vector<2x8x128xf32>
    %c0_83 = arith.constant 0 : index
    %c0_84 = arith.constant 0 : index
    %c0_85 = arith.constant 0 : index
    %249 = vector.load %arg24[%c0_83, %c0_84, %c0_85] : memref<2x8x128xf32, #tpu.memory_space<vmem>>, vector<2x8x128xf32>
    tpu.vector_store %arg24[%c0_83, %c0_84, %c0_85], %248 {strides = array<i32>} : memref<2x8x128xf32, #tpu.memory_space<vmem>>, vector<2x8x128xf32>,
    return
  }
}

</mosaic_0001>

<llo_original>
// kernel: tpu_custom_call.1
$region0: #{tpu_custom_call.1}
  #allocation0 [shape = 'u32[]', space=smem, size = 0x4, offset = 0x4, fixed_abs, tag = 'smem constant byte address 0x4 - core index']
  #allocation1 [shape = 'u32[144,128]{1,0:T(1,128)}', space=vmem, size = 0x12000, scoped, tag = 'internal scratch']
  %s0 = inlined_call_operand.hbm [shape: f32[2,8,128], index: 0, kind: input, shape index: {}]
  %s1 = inlined_call_operand.hbm [shape: f32[2,8,128], index: 1, kind: input, shape index: {}]
  %s2 = inlined_call_operand.hbm [shape: f32[16,16], index: 2, kind: input, shape index: {}]
  %s3 = inlined_call_operand.hbm [shape: f32[16,16], index: 3, kind: input, shape index: {}]
  %s4 = inlined_call_operand.hbm [shape: bf16[128,384], index: 4, kind: input, shape index: {}]
  %s5 = inlined_call_operand.vmem [shape: f32[1,384], index: 5, kind: input, shape index: {}]
  %s6 = inlined_call_operand.hbm [shape: bf16[128,128], index: 6, kind: input, shape index: {}]
  %s7 = inlined_call_operand.vmem [shape: f32[1,128], index: 7, kind: input, shape index: {}]
  %s8 = inlined_call_operand.hbm [shape: bf16[128,128], index: 8, kind: input, shape index: {}]
  %s9 = inlined_call_operand.vmem [shape: f32[1,128], index: 9, kind: input, shape index: {}]
  %s10 = inlined_call_operand.hbm [shape: bf16[128,256], index: 10, kind: input, shape index: {}]
  %s11 = inlined_call_operand.vmem [shape: f32[1,256], index: 11, kind: input, shape index: {}]
  %s12 = inlined_call_operand.hbm [shape: bf16[128,128], index: 12, kind: input, shape index: {}]
  %s13 = inlined_call_operand.vmem [shape: f32[1,128], index: 13, kind: input, shape index: {}]
  %s14 = inlined_call_operand.hbm [shape: bf16[128,256], index: 14, kind: input, shape index: {}]
  %s15 = inlined_call_operand.vmem [shape: f32[1,256], index: 15, kind: input, shape index: {}]
  %s16 = inlined_call_operand.hbm [shape: bf16[256,128], index: 16, kind: input, shape index: {}]
  %s17 = inlined_call_operand.vmem [shape: f32[1,128], index: 17, kind: input, shape index: {}]
  %s18 = inlined_call_operand.vmem [shape: f32[1,128], index: 18, kind: input, shape index: {}]
  %s19 = inlined_call_operand.vmem [shape: f32[1,128], index: 19, kind: input, shape index: {}]
  %s20 = inlined_call_operand.vmem [shape: f32[1,128], index: 20, kind: input, shape index: {}]
  %s21 = inlined_call_operand.vmem [shape: f32[1,128], index: 21, kind: input, shape index: {}]
  %s22 = inlined_call_operand.vmem [shape: f32[1,128], index: 22, kind: input, shape index: {}]
  %s23 = inlined_call_operand.vmem [shape: f32[1,128], index: 23, kind: input, shape index: {}]
  %s24 = inlined_call_operand.hbm [shape: f32[2,8,128], index: 24, kind: output, shape index: {}]
  %s25 = sld [smem:[#allocation0]]
  $region150: #{tpu_custom_call.1} parent=0
    _
  %s27 = ssub.s32 1, %s25
  %s28 = scalar_select 0, %s27, %s25
  $region1: #{tpu_custom_call.1} parent=0
    #allocation2 [shape = 'u8[8192]{0}', space=vmem, size = 0x2000, scoped, tag = 'input window, operand 0, single buffered']
    #allocation3 [shape = 's32[1]{0}', space=sflag, size = 0x4, scoped, tag = 'scoped memory for tpu_custom_call.1']
    #allocation4 [shape = 's32[1]{0}', space=sflag, size = 0x4, scoped, tag = 'scoped memory for tpu_custom_call.1']
    #allocation5 [shape = 'u8[8192]{0}', space=vmem, size = 0x2000, scoped, tag = 'input window, operand 1, single buffered']
    #allocation6 [shape = 's32[1]{0}', space=sflag, size = 0x4, scoped, tag = 'scoped memory for tpu_custom_call.1']
    #allocation7 [shape = 'u8[8192]{0}', space=vmem, size = 0x2000, scoped, tag = 'input window, operand 2, single buffered']
    #allocation8 [shape = 'u8[8192]{0}', space=vmem, size = 0x2000, scoped, tag = 'input window, operand 3, single buffered']
    #allocation9 [shape = 's32[1]{0}', space=sflag, size = 0x4, scoped, tag = 'scoped memory for tpu_custom_call.1']
    #allocation10 [shape = 'u8[98304]{0}', space=vmem, size = 0x18000, scoped, tag = 'input window, operand 4, single buffered']
    #allocation11 [shape = 'u8[32768]{0}', space=vmem, size = 0x8000, scoped, tag = 'input window, operand 6, single buffered']
    #allocation12 [shape = 's32[1]{0}', space=sflag, size = 0x4, scoped, tag = 'scoped memory for tpu_custom_call.1']
    #allocation13 [shape = 'u8[32768]{0}', space=vmem, size = 0x8000, scoped, tag = 'input window, operand 8, single buffered']
    #allocation14 [shape = 'u8[65536]{0}', space=vmem, size = 0x10000, scoped, tag = 'input window, operand 10, single buffered']
    #allocation15 [shape = 's32[1]{0}', space=sflag, size = 0x4, scoped, tag = 'scoped memory for tpu_custom_call.1']
    #allocation16 [shape = 'u8[32768]{0}', space=vmem, size = 0x8000, scoped, tag = 'input window, operand 12, single buffered']
    #allocation17 [shape = 'u8[65536]{0}', space=vmem, size = 0x10000, scoped, tag = 'input window, operand 14, single buffered']
    #allocation18 [shape = 's32[1]{0}', space=sflag, size = 0x4, scoped, tag = 'scoped memory for tpu_custom_call.1']
    #allocation19 [shape = 'u8[65536]{0}', space=vmem, size = 0x10000, scoped, tag = 'input window, operand 16, single buffered']
    #allocation20 [shape = 'u8[8192]{0}', space=vmem, size = 0x2000, scoped, tag = 'output window, operand 0, single buffered']
    %29 = vsyncpa [#allocation3], 0
    %30 = vsyncpa [#allocation6], 0
    %31 = vsyncpa [#allocation9], 0
    %32 = vsyncpa [#allocation12], 0
    %33 = vsyncpa [#allocation15], 0
    %34 = vsyncpa [#allocation18], 0
    %35 = vsyncpa [#allocation4], 0
    // Predicated region
    $region2: #{tpu_custom_call.1} parent=1 // pred_check
      _
    $region3: #{tpu_custom_call.1} parent=1 // pred_check_branch
      %37 = sbr.rel (0) target = $region5
    $region4: #{tpu_custom_call.1} parent=1 // pred_region
      %s39 = ssub.s32 256, 256
      %40 = vsyncadd [#allocation3], %s39
      %s41 = sshll.u32 [#allocation2], 4
      %s42 = int_to_ptr.vmem [resolvable:$true] %s41
      %47 = dma.hbm_to_vmem [thread:$0]  %s0, 256, %s42, [#allocation3], 128, 128, 8
    $region5: #{tpu_custom_call.1} parent=1 // pred_fallthru
      _
    // Predicated region
    $region6: #{tpu_custom_call.1} parent=1 // pred_check
      _
    $region7: #{tpu_custom_call.1} parent=1 // pred_check_branch
      %49 = sbr.rel (0) target = $region9
    $region8: #{tpu_custom_call.1} parent=1 // pred_region
      %s51 = ssub.s32 256, 256
      %52 = vsyncadd [#allocation6], %s51
      %s53 = sshll.u32 [#allocation5], 4
      %s54 = int_to_ptr.vmem [resolvable:$true] %s53
      %59 = dma.hbm_to_vmem [thread:$0]  %s1, 256, %s54, [#allocation6], 128, 128, 8
    $region9: #{tpu_custom_call.1} parent=1 // pred_fallthru
      _
    // Predicated region
    $region10: #{tpu_custom_call.1} parent=1 // pred_check
      _
    $region11: #{tpu_custom_call.1} parent=1 // pred_check_branch
      %61 = sbr.rel (0) target = $region13
    $region12: #{tpu_custom_call.1} parent=1 // pred_region
      %s63 = ssub.s32 256, 256
      %64 = vsyncadd [#allocation6], %s63
      %s65 = sshll.u32 [#allocation7], 4
      %s66 = int_to_ptr.vmem [resolvable:$true] %s65
      %71 = dma.hbm_to_vmem [thread:$0]  %s2, 256, %s66, [#allocation6], 128, 128, 8
    $region13: #{tpu_custom_call.1} parent=1 // pred_fallthru
      _
    // Predicated region
    $region14: #{tpu_custom_call.1} parent=1 // pred_check
      _
    $region15: #{tpu_custom_call.1} parent=1 // pred_check_branch
      %73 = sbr.rel (0) target = $region17
    $region16: #{tpu_custom_call.1} parent=1 // pred_region
      %s75 = ssub.s32 256, 256
      %76 = vsyncadd [#allocation9], %s75
      %s77 = sshll.u32 [#allocation8], 4
      %s78 = int_to_ptr.vmem [resolvable:$true] %s77
      %83 = dma.hbm_to_vmem [thread:$0]  %s3, 256, %s78, [#allocation9], 128, 128, 8
    $region17: #{tpu_custom_call.1} parent=1 // pred_fallthru
      _
    // Predicated region
    $region18: #{tpu_custom_call.1} parent=1 // pred_check
      _
    $region19: #{tpu_custom_call.1} parent=1 // pred_check_branch
      %85 = sbr.rel (0) target = $region21
    $region20: #{tpu_custom_call.1} parent=1 // pred_region
      %s87 = ssub.s32 3072, 3072
      %88 = vsyncadd [#allocation9], %s87
      %s89 = sshll.u32 [#allocation10], 4
      %s90 = int_to_ptr.vmem [resolvable:$true] %s89
      %95 = dma.hbm_to_vmem [thread:$0]  %s4, 3072, %s90, [#allocation9], 192, 192, 12
    $region21: #{tpu_custom_call.1} parent=1 // pred_fallthru
      _
    // Predicated region
    $region22: #{tpu_custom_call.1} parent=1 // pred_check
      _
    $region23: #{tpu_custom_call.1} parent=1 // pred_check_branch
      %97 = sbr.rel (0) target = $region25
    $region24: #{tpu_custom_call.1} parent=1 // pred_region
      _
    $region25: #{tpu_custom_call.1} parent=1 // pred_fallthru
      _
    // Predicated region
    $region26: #{tpu_custom_call.1} parent=1 // pred_check
      _
    $region27: #{tpu_custom_call.1} parent=1 // pred_check_branch
      %99 = sbr.rel (0) target = $region29
    $region28: #{tpu_custom_call.1} parent=1 // pred_region
      %s101 = ssub.s32 1024, 1024
      %102 = vsyncadd [#allocation12], %s101
      %s103 = sshll.u32 [#allocation11], 4
      %s104 = int_to_ptr.vmem [resolvable:$true] %s103
      %109 = dma.hbm_to_vmem [thread:$0]  %s6, 1024, %s104, [#allocation12], 64, 64, 4
    $region29: #{tpu_custom_call.1} parent=1 // pred_fallthru
      _
    // Predicated region
    $region30: #{tpu_custom_call.1} parent=1 // pred_check
      _
    $region31: #{tpu_custom_call.1} parent=1 // pred_check_branch
      %111 = sbr.rel (0) target = $region33
    $region32: #{tpu_custom_call.1} parent=1 // pred_region
      _
    $region33: #{tpu_custom_call.1} parent=1 // pred_fallthru
      _
    // Predicated region
    $region34: #{tpu_custom_call.1} parent=1 // pred_check
      _
    $region35: #{tpu_custom_call.1} parent=1 // pred_check_branch
      %113 = sbr.rel (0) target = $region37
    $region36: #{tpu_custom_call.1} parent=1 // pred_region
      %s115 = ssub.s32 1024, 1024
      %116 = vsyncadd [#allocation12], %s115
      %s117 = sshll.u32 [#allocation13], 4
      %s118 = int_to_ptr.vmem [resolvable:$true] %s117
      %123 = dma.hbm_to_vmem [thread:$0]  %s8, 1024, %s118, [#allocation12], 64, 64, 4
    $region37: #{tpu_custom_call.1} parent=1 // pred_fallthru
      _
    // Predicated region
    $region38: #{tpu_custom_call.1} parent=1 // pred_check
      _
    $region39: #{tpu_custom_call.1} parent=1 // pred_check_branch
      %125 = sbr.rel (0) target = $region41
    $region40: #{tpu_custom_call.1} parent=1 // pred_region
      _
    $region41: #{tpu_custom_call.1} parent=1 // pred_fallthru
      _
    // Predicated region
    $region42: #{tpu_custom_call.1} parent=1 // pred_check
      _
    $region43: #{tpu_custom_call.1} parent=1 // pred_check_branch
      %127 = sbr.rel (0) target = $region45
    $region44: #{tpu_custom_call.1} parent=1 // pred_region
      %s129 = ssub.s32 2048, 2048
      %130 = vsyncadd [#allocation15], %s129
      %s131 = sshll.u32 [#allocation14], 4
      %s132 = int_to_ptr.vmem [resolvable:$true] %s131
      %137 = dma.hbm_to_vmem [thread:$0]  %s10, 2048, %s132, [#allocation15], 128, 128, 8
    $region45: #{tpu_custom_call.1} parent=1 // pred_fallthru
      _
    // Predicated region
    $region46: #{tpu_custom_call.1} parent=1 // pred_check
      _
    $region47: #{tpu_custom_call.1} parent=1 // pred_check_branch
      %139 = sbr.rel (0) target = $region49
    $region48: #{tpu_custom_call.1} parent=1 // pred_region
      _
    $region49: #{tpu_custom_call.1} parent=1 // pred_fallthru
      _
    // Predicated region
    $region50: #{tpu_custom_call.1} parent=1 // pred_check
      _
    $region51: #{tpu_custom_call.1} parent=1 // pred_check_branch
      %141 = sbr.rel (0) target = $region53
    $region52: #{tpu_custom_call.1} parent=1 // pred_region
      %s143 = ssub.s32 1024, 1024
      %144 = vsyncadd [#allocation15], %s143
      %s145 = sshll.u32 [#allocation16], 4
      %s146 = int_to_ptr.vmem [resolvable:$true] %s145
      %151 = dma.hbm_to_vmem [thread:$0]  %s12, 1024, %s146, [#allocation15], 64, 64, 4
    $region53: #{tpu_custom_call.1} parent=1 // pred_fallthru
      _
    // Predicated region
    $region54: #{tpu_custom_call.1} parent=1 // pred_check
      _
    $region55: #{tpu_custom_call.1} parent=1 // pred_check_branch
      %153 = sbr.rel (0) target = $region57
    $region56: #{tpu_custom_call.1} parent=1 // pred_region
      _
    $region57: #{tpu_custom_call.1} parent=1 // pred_fallthru
      _
    // Predicated region
    $region58: #{tpu_custom_call.1} parent=1 // pred_check
      _
    $region59: #{tpu_custom_call.1} parent=1 // pred_check_branch
      %155 = sbr.rel (0) target = $region61
    $region60: #{tpu_custom_call.1} parent=1 // pred_region
      %s157 = ssub.s32 2048, 2048
      %158 = vsyncadd [#allocation18], %s157
      %s159 = sshll.u32 [#allocation17], 4
      %s160 = int_to_ptr.vmem [resolvable:$true] %s159
      %165 = dma.hbm_to_vmem [thread:$0]  %s14, 2048, %s160, [#allocation18], 128, 128, 8
    $region61: #{tpu_custom_call.1} parent=1 // pred_fallthru
      _
    // Predicated region
    $region62: #{tpu_custom_call.1} parent=1 // pred_check
      _
    $region63: #{tpu_custom_call.1} parent=1 // pred_check_branch
      %167 = sbr.rel (0) target = $region65
    $region64: #{tpu_custom_call.1} parent=1 // pred_region
      _
    $region65: #{tpu_custom_call.1} parent=1 // pred_fallthru
      _
    // Predicated region
    $region66: #{tpu_custom_call.1} parent=1 // pred_check
      _
    $region67: #{tpu_custom_call.1} parent=1 // pred_check_branch
      %169 = sbr.rel (0) target = $region69
    $region68: #{tpu_custom_call.1} parent=1 // pred_region
      %s171 = ssub.s32 2048, 2048
      %172 = vsyncadd [#allocation18], %s171
      %s173 = sshll.u32 [#allocation19], 4
      %s174 = int_to_ptr.vmem [resolvable:$true] %s173
      %179 = dma.hbm_to_vmem [thread:$0]  %s16, 2048, %s174, [#allocation18], 64, 64, 4
    $region69: #{tpu_custom_call.1} parent=1 // pred_fallthru
      _
    // Predicated region
    $region70: #{tpu_custom_call.1} parent=1 // pred_check
      _
    $region71: #{tpu_custom_call.1} parent=1 // pred_check_branch
      %181 = sbr.rel (0) target = $region73
    $region72: #{tpu_custom_call.1} parent=1 // pred_region
      _
    $region73: #{tpu_custom_call.1} parent=1 // pred_fallthru
      _
    // Predicated region
    $region74: #{tpu_custom_call.1} parent=1 // pred_check
      _
    $region75: #{tpu_custom_call.1} parent=1 // pred_check_branch
      %183 = sbr.rel (0) target = $region77
    $region76: #{tpu_custom_call.1} parent=1 // pred_region
      _
    $region77: #{tpu_custom_call.1} parent=1 // pred_fallthru
      _
    // Predicated region
    $region78: #{tpu_custom_call.1} parent=1 // pred_check
      _
    $region79: #{tpu_custom_call.1} parent=1 // pred_check_branch
      %185 = sbr.rel (0) target = $region81
    $region80: #{tpu_custom_call.1} parent=1 // pred_region
      _
    $region81: #{tpu_custom_call.1} parent=1 // pred_fallthru
      _
    // Predicated region
    $region82: #{tpu_custom_call.1} parent=1 // pred_check
      _
    $region83: #{tpu_custom_call.1} parent=1 // pred_check_branch
      %187 = sbr.rel (0) target = $region85
    $region84: #{tpu_custom_call.1} parent=1 // pred_region
      _
    $region85: #{tpu_custom_call.1} parent=1 // pred_fallthru
      _
    // Predicated region
    $region86: #{tpu_custom_call.1} parent=1 // pred_check
      _
    $region87: #{tpu_custom_call.1} parent=1 // pred_check_branch
      %189 = sbr.rel (0) target = $region89
    $region88: #{tpu_custom_call.1} parent=1 // pred_region
      _
    $region89: #{tpu_custom_call.1} parent=1 // pred_fallthru
      _
    // Predicated region
    $region90: #{tpu_custom_call.1} parent=1 // pred_check
      _
    $region91: #{tpu_custom_call.1} parent=1 // pred_check_branch
      %191 = sbr.rel (0) target = $region93
    $region92: #{tpu_custom_call.1} parent=1 // pred_region
      _
    $region93: #{tpu_custom_call.1} parent=1 // pred_fallthru
      _
    // Predicated region
    $region94: #{tpu_custom_call.1} parent=1 // pred_check
      _
    $region95: #{tpu_custom_call.1} parent=1 // pred_check_branch
      %193 = sbr.rel (0) target = $region97
    $region96: #{tpu_custom_call.1} parent=1 // pred_region
      _
    $region97: #{tpu_custom_call.1} parent=1 // pred_fallthru
      _
    // Predicated region
    $region98: #{tpu_custom_call.1} parent=1 // pred_check
      _
    $region99: #{tpu_custom_call.1} parent=1 // pred_check_branch
      %195 = sbr.rel (0) target = $region101
    $region100: #{tpu_custom_call.1} parent=1 // pred_region
      %196 = dma.done [#allocation3], 256
    $region101: #{tpu_custom_call.1} parent=1 // pred_fallthru
      _
    // Predicated region
    $region102: #{tpu_custom_call.1} parent=1 // pred_check
      _
    $region103: #{tpu_custom_call.1} parent=1 // pred_check_branch
      %198 = sbr.rel (0) target = $region105
    $region104: #{tpu_custom_call.1} parent=1 // pred_region
      %199 = dma.done [#allocation6], 256
    $region105: #{tpu_custom_call.1} parent=1 // pred_fallthru
      _
    // Predicated region
    $region106: #{tpu_custom_call.1} parent=1 // pred_check
      _
    $region107: #{tpu_custom_call.1} parent=1 // pred_check_branch
      %201 = sbr.rel (0) target = $region109
    $region108: #{tpu_custom_call.1} parent=1 // pred_region
      %202 = dma.done [#allocation6], 256
    $region109: #{tpu_custom_call.1} parent=1 // pred_fallthru
      _
    // Predicated region
    $region110: #{tpu_custom_call.1} parent=1 // pred_check
      _
    $region111: #{tpu_custom_call.1} parent=1 // pred_check_branch
      %204 = sbr.rel (0) target = $region113
    $region112: #{tpu_custom_call.1} parent=1 // pred_region
      %205 = dma.done [#allocation9], 256
    $region113: #{tpu_custom_call.1} parent=1 // pred_fallthru
      _
    // Predicated region
    $region114: #{tpu_custom_call.1} parent=1 // pred_check
      _
    $region115: #{tpu_custom_call.1} parent=1 // pred_check_branch
      %207 = sbr.rel (0) target = $region117
    $region116: #{tpu_custom_call.1} parent=1 // pred_region
      %208 = dma.done [#allocation9], 3072
    $region117: #{tpu_custom_call.1} parent=1 // pred_fallthru
      _
    // Predicated region
    $region118: #{tpu_custom_call.1} parent=1 // pred_check
      _
    $region119: #{tpu_custom_call.1} parent=1 // pred_check_branch
      %210 = sbr.rel (0) target = $region121
    $region120: #{tpu_custom_call.1} parent=1 // pred_region
      %211 = dma.done [#allocation12], 1024
    $region121: #{tpu_custom_call.1} parent=1 // pred_fallthru
      _
    // Predicated region
    $region122: #{tpu_custom_call.1} parent=1 // pred_check
      _
    $region123: #{tpu_custom_call.1} parent=1 // pred_check_branch
      %213 = sbr.rel (0) target = $region125
    $region124: #{tpu_custom_call.1} parent=1 // pred_region
      %214 = dma.done [#allocation12], 1024
    $region125: #{tpu_custom_call.1} parent=1 // pred_fallthru
      _
    // Predicated region
    $region126: #{tpu_custom_call.1} parent=1 // pred_check
      _
    $region127: #{tpu_custom_call.1} parent=1 // pred_check_branch
      %216 = sbr.rel (0) target = $region129
    $region128: #{tpu_custom_call.1} parent=1 // pred_region
      %217 = dma.done [#allocation15], 2048
    $region129: #{tpu_custom_call.1} parent=1 // pred_fallthru
      _
    // Predicated region
    $region130: #{tpu_custom_call.1} parent=1 // pred_check
      _
    $region131: #{tpu_custom_call.1} parent=1 // pred_check_branch
      %219 = sbr.rel (0) target = $region133
    $region132: #{tpu_custom_call.1} parent=1 // pred_region
      %220 = dma.done [#allocation15], 1024
    $region133: #{tpu_custom_call.1} parent=1 // pred_fallthru
      _
    // Predicated region
    $region134: #{tpu_custom_call.1} parent=1 // pred_check
      _
    $region135: #{tpu_custom_call.1} parent=1 // pred_check_branch
      %222 = sbr.rel (0) target = $region137
    $region136: #{tpu_custom_call.1} parent=1 // pred_region
      %223 = dma.done [#allocation18], 2048
    $region137: #{tpu_custom_call.1} parent=1 // pred_fallthru
      _
    // Predicated region
    $region138: #{tpu_custom_call.1} parent=1 // pred_check
      _
    $region139: #{tpu_custom_call.1} parent=1 // pred_check_branch
      %225 = sbr.rel (0) target = $region141
    $region140: #{tpu_custom_call.1} parent=1 // pred_region
      %226 = dma.done [#allocation18], 2048
    $region141: #{tpu_custom_call.1} parent=1 // pred_fallthru
      _
    %v228 = vld [vmem:[#allocation2] sm:$0xff]
    %v229 = vld [vmem:[#allocation2 + $0x8] sm:$0xff]
    %v230 = vld [vmem:[#allocation5] sm:$0xff]
    %v231 = vld [vmem:[#allocation5 + $0x8] sm:$0xff]
    %v232 = vpack.c.bf16 %v229, %v228
    %v233 = vld [vmem:[#allocation10] sm:$0xff]
    %v234 = vld [vmem:[#allocation10 + $0x8] sm:$0xf]
    %v235 = vld [vmem:[#allocation10 + $0xc] sm:$0xff]
    %v236 = vld [vmem:[#allocation10 + $0x14] sm:$0xf]
    %v237 = vld [vmem:[#allocation10 + $0x18] sm:$0xff]
    %v238 = vld [vmem:[#allocation10 + $0x20] sm:$0xf]
    %v239 = vld [vmem:[#allocation10 + $0x24] sm:$0xff]
    %v240 = vld [vmem:[#allocation10 + $0x2c] sm:$0xf]
    %v241 = vld [vmem:[#allocation10 + $0x30] sm:$0xff]
    %v242 = vld [vmem:[#allocation10 + $0x38] sm:$0xf]
    %v243 = vld [vmem:[#allocation10 + $0x3c] sm:$0xff]
    %v244 = vld [vmem:[#allocation10 + $0x44] sm:$0xf]
    %v245 = vld [vmem:[#allocation10 + $0x48] sm:$0xff]
    %v246 = vld [vmem:[#allocation10 + $0x50] sm:$0xf]
    %v247 = vld [vmem:[#allocation10 + $0x54] sm:$0xff]
    %v248 = vld [vmem:[#allocation10 + $0x5c] sm:$0xf]
    %v249 = vld [vmem:[#allocation10 + $0x60] sm:$0xff]
    %v250 = vld [vmem:[#allocation10 + $0x68] sm:$0xf]
    %v251 = vld [vmem:[#allocation10 + $0x6c] sm:$0xff]
    %v252 = vld [vmem:[#allocation10 + $0x74] sm:$0xf]
    %v253 = vld [vmem:[#allocation10 + $0x78] sm:$0xff]
    %v254 = vld [vmem:[#allocation10 + $0x80] sm:$0xf]
    %v255 = vld [vmem:[#allocation10 + $0x84] sm:$0xff]
    %v256 = vld [vmem:[#allocation10 + $0x8c] sm:$0xf]
    %v257 = vld [vmem:[#allocation10 + $0x90] sm:$0xff]
    %v258 = vld [vmem:[#allocation10 + $0x98] sm:$0xf]
    %v259 = vld [vmem:[#allocation10 + $0x9c] sm:$0xff]
    %v260 = vld [vmem:[#allocation10 + $0xa4] sm:$0xf]
    %v261 = vld [vmem:[#allocation10 + $0xa8] sm:$0xff]
    %v262 = vld [vmem:[#allocation10 + $0xb0] sm:$0xf]
    %v263 = vld [vmem:[#allocation10 + $0xb4] sm:$0xff]
    %v264 = vld [vmem:[#allocation10 + $0xbc] sm:$0xf]
    %v265 = vld [vmem:[%s5] sm:$0x7]
    %v267 = vlaneseq
    %v268 = vshrl.u32 %v267, 7
    %v269 = vsub.s32 0, %v268
    %v270 = vrot.slane %v265, %v269
    %v271 = vlaneseq
    %v272 = vshrl.u32 %v271, 7
    %v273 = vsub.s32 1, %v272
    %v274 = vrot.slane %v265, %v273
    %v275 = vlaneseq
    %v276 = vshrl.u32 %v275, 7
    %v277 = vsub.s32 2, %v276
    %v278 = vrot.slane %v265, %v277
    %v314 = vunpack.c.l.b16 %v233
    %v315 = vunpack.c.h.b16 %v233
    %v316 = vunpack.c.l.b16 %v234
    %v317 = vunpack.c.l.b16 %v235
    %v318 = vunpack.c.h.b16 %v235
    %v319 = vunpack.c.l.b16 %v236
    %v320 = vunpack.c.l.b16 %v237
    %v321 = vunpack.c.h.b16 %v237
    %v322 = vunpack.c.l.b16 %v238
    %v323 = vunpack.c.l.b16 %v239
    %v324 = vunpack.c.h.b16 %v239
    %v325 = vunpack.c.l.b16 %v240
    %v326 = vunpack.c.l.b16 %v241
    %v327 = vunpack.c.h.b16 %v241
    %v328 = vunpack.c.l.b16 %v242
    %v329 = vunpack.c.l.b16 %v243
    %v330 = vunpack.c.h.b16 %v243
    %v331 = vunpack.c.l.b16 %v244
    %v332 = vunpack.c.l.b16 %v245
    %v333 = vunpack.c.h.b16 %v245
    %v334 = vunpack.c.l.b16 %v246
    %v335 = vunpack.c.l.b16 %v247
    %v336 = vunpack.c.h.b16 %v247
    %v337 = vunpack.c.l.b16 %v248
    %v338 = vunpack.c.l.b16 %v249
    %v339 = vunpack.c.h.b16 %v249
    %v340 = vunpack.c.l.b16 %v250
    %v341 = vunpack.c.l.b16 %v251
    %v342 = vunpack.c.h.b16 %v251
    %v343 = vunpack.c.l.b16 %v252
    %v344 = vunpack.c.l.b16 %v253
    %v345 = vunpack.c.h.b16 %v253
    %v346 = vunpack.c.l.b16 %v254
    %v347 = vunpack.c.l.b16 %v255
    %v348 = vunpack.c.h.b16 %v255
    %v349 = vunpack.c.l.b16 %v256
    %v350 = vunpack.c.l.b16 %v257
    %v351 = vunpack.c.h.b16 %v257
    %v352 = vunpack.c.l.b16 %v258
    %v353 = vunpack.c.l.b16 %v259
    %v354 = vunpack.c.h.b16 %v259
    %v355 = vunpack.c.l.b16 %v260
    %v356 = vunpack.c.l.b16 %v261
    %v357 = vunpack.c.h.b16 %v261
    %v358 = vunpack.c.l.b16 %v262
    %v359 = vunpack.c.l.b16 %v263
    %v360 = vunpack.c.h.b16 %v263
    %v361 = vunpack.c.l.b16 %v264
    %v362 = vpack.c.b16 %v317, %v314
    %v363 = vpack.c.b16 %v318, %v315
    %v364 = vpack.c.b16 %v319, %v316
    %v365 = vpack.c.b16 %v323, %v320
    %v366 = vpack.c.b16 %v324, %v321
    %v367 = vpack.c.b16 %v325, %v322
    %v368 = vpack.c.b16 %v329, %v326
    %v369 = vpack.c.b16 %v330, %v327
    %v370 = vpack.c.b16 %v331, %v328
    %v371 = vpack.c.b16 %v335, %v332
    %v372 = vpack.c.b16 %v336, %v333
    %v373 = vpack.c.b16 %v337, %v334
    %v374 = vpack.c.b16 %v341, %v338
    %v375 = vpack.c.b16 %v342, %v339
    %v376 = vpack.c.b16 %v343, %v340
    %v377 = vpack.c.b16 %v347, %v344
    %v378 = vpack.c.b16 %v348, %v345
    %v379 = vpack.c.b16 %v349, %v346
    %v380 = vpack.c.b16 %v353, %v350
    %v381 = vpack.c.b16 %v354, %v351
    %v382 = vpack.c.b16 %v355, %v352
    %v383 = vpack.c.b16 %v359, %v356
    %v384 = vpack.c.b16 %v360, %v357
    %v385 = vpack.c.b16 %v361, %v358
    %410 = vmatprep.subr.bf16.mxu0 %v363
    %411 = vmatpush1.bf16.msra.mxu0 %v362
    %412 = vmatprep.subr.bf16.mxu0 %v366
    %413 = vmatpush1.bf16.msra.mxu0 %v365
    %414 = vmatprep.subr.bf16.mxu0 %v369
    %415 = vmatpush1.bf16.msra.mxu0 %v368
    %416 = vmatprep.subr.bf16.mxu0 %v372
    %417 = vmatpush1.bf16.msra.mxu0 %v371
    %418 = vmatprep.subr.bf16.mxu0 %v375
    %419 = vmatpush1.bf16.msra.mxu0 %v374
    %420 = vmatprep.subr.bf16.mxu0 %v378
    %421 = vmatpush1.bf16.msra.mxu0 %v377
    %422 = vmatprep.subr.bf16.mxu0 %v381
    %423 = vmatpush1.bf16.msra.mxu0 %v380
    %424 = vmatprep.subr.bf16.mxu0 %v384
    %425 = vmatpush1.bf16.msra.mxu0 %v383
    %426 = vmatprep.subr.bf16.mxu0 0
    %427 = vmatpush1.bf16.msra.mxu0 0
    %428 = vmatprep.subr.bf16.mxu0 0
    %429 = vmatpush1.bf16.msra.mxu0 0
    %430 = vmatprep.subr.bf16.mxu0 0
    %431 = vmatpush1.bf16.msra.mxu0 0
    %432 = vmatprep.subr.bf16.mxu0 0
    %433 = vmatpush1.bf16.msra.mxu0 0
    %434 = vmatprep.subr.bf16.mxu0 0
    %435 = vmatpush1.bf16.msra.mxu0 0
    %436 = vmatprep.subr.bf16.mxu0 0
    %437 = vmatpush1.bf16.msra.mxu0 0
    %438 = vmatprep.subr.bf16.mxu0 0
    %439 = vmatpush1.bf16.msra.mxu0 0
    %440 = vmatprep.subr.bf16.mxu0 0
    %441 = vmatpush1.bf16.msra.mxu0 0
    %442 = vmatprep.mubr.bf16.mxu0 0
    %443 = vmatmul.mubr.bf16.gmra.mrb[0].mxu0 %v232
    %v444 = vpop.f32.mrb[0].mxu0
    %v445 = vadd.f32 %v270, %v444
    %v446 = vpop.f32.mrb[0].mxu0
    %v447 = vadd.f32 %v274, %v446
    %v448 = vpop.f32.mrb[0].mxu0
    %v449 = vadd.f32 %v270, %v448
    %v450 = vpop.f32.mrb[0].mxu0
    %v451 = vadd.f32 %v274, %v450
    %452 = vdwg.mxu0
    %453 = vmatprep.subr.bf16.mxu0 0
    %454 = vmatpush1.bf16.msra.mxu0 %v364
    %455 = vmatprep.subr.bf16.mxu0 0
    %456 = vmatpush1.bf16.msra.mxu0 %v367
    %457 = vmatprep.subr.bf16.mxu0 0
    %458 = vmatpush1.bf16.msra.mxu0 %v370
    %459 = vmatprep.subr.bf16.mxu0 0
    %460 = vmatpush1.bf16.msra.mxu0 %v373
    %461 = vmatprep.subr.bf16.mxu0 0
    %462 = vmatpush1.bf16.msra.mxu0 %v376
    %463 = vmatprep.subr.bf16.mxu0 0
    %464 = vmatpush1.bf16.msra.mxu0 %v379
    %465 = vmatprep.subr.bf16.mxu0 0
    %466 = vmatpush1.bf16.msra.mxu0 %v382
    %467 = vmatprep.subr.bf16.mxu0 0
    %468 = vmatpush1.bf16.msra.mxu0 %v385
    %469 = vmatprep.subr.bf16.mxu0 0
    %470 = vmatpush1.bf16.msra.mxu0 0
    %471 = vmatprep.subr.bf16.mxu0 0
    %472 = vmatpush1.bf16.msra.mxu0 0
    %473 = vmatprep.subr.bf16.mxu0 0
    %474 = vmatpush1.bf16.msra.mxu0 0
    %475 = vmatprep.subr.bf16.mxu0 0
    %476 = vmatpush1.bf16.msra.mxu0 0
    %477 = vmatprep.subr.bf16.mxu0 0
    %478 = vmatpush1.bf16.msra.mxu0 0
    %479 = vmatprep.subr.bf16.mxu0 0
    %480 = vmatpush1.bf16.msra.mxu0 0
    %481 = vmatprep.subr.bf16.mxu0 0
    %482 = vmatpush1.bf16.msra.mxu0 0
    %483 = vmatprep.subr.bf16.mxu0 0
    %484 = vmatpush1.bf16.msra.mxu0 0
    %485 = vmatprep.mubr.bf16.mxu0 0
    %486 = vmatmul.mubr.bf16.gmra.mrb[0].mxu0 %v232
    %v487 = vpop.f32.mrb[0].mxu0
    %v488 = vadd.f32 %v278, %v487
    %v489 = vpop.f32.mrb[0].mxu0
    %v490 = vpop.f32.mrb[0].mxu0
    %v491 = vadd.f32 %v278, %v490
    %v492 = vpop.f32.mrb[0].mxu0
    %493 = vdwg.mxu0
    %v494 = vmul.f32 %v445, 0.17677669
    %v495 = vmul.f32 %v449, 0.17677669
    %v496 = vld [vmem:[#allocation7] sm:$0xff]
    %v497 = vld [vmem:[#allocation7 + $0x8] sm:$0xff]
    %500 = vrot.lane.b32.xlu0 %v494, 96
    %v501 = vpop.permute.xlu0 %500
    %502 = vrot.lane.b32.xlu0 %v495, 96
    %v503 = vpop.permute.xlu0 %502
    %506 = vrot.lane.b32.xlu0 %v494, 64
    %v507 = vpop.permute.xlu0 %506
    %508 = vrot.lane.b32.xlu0 %v495, 64
    %v509 = vpop.permute.xlu0 %508
    %512 = vrot.lane.b32.xlu0 %v494, 32
    %v513 = vpop.permute.xlu0 %512
    %514 = vrot.lane.b32.xlu0 %v495, 32
    %v515 = vpop.permute.xlu0 %514
    %v518 = vpack.c.bf16 %v495, %v494
    %v519 = vpack.c.bf16 %v503, %v501
    %v520 = vpack.c.bf16 %v509, %v507
    %v521 = vpack.c.bf16 %v515, %v513
    %524 = vrot.lane.b32.xlu0 %v447, 96
    %v525 = vpop.permute.xlu0 %524
    %526 = vrot.lane.b32.xlu0 %v451, 96
    %v527 = vpop.permute.xlu0 %526
    %530 = vrot.lane.b32.xlu0 %v447, 64
    %v531 = vpop.permute.xlu0 %530
    %532 = vrot.lane.b32.xlu0 %v451, 64
    %v533 = vpop.permute.xlu0 %532
    %536 = vrot.lane.b32.xlu0 %v447, 32
    %v537 = vpop.permute.xlu0 %536
    %538 = vrot.lane.b32.xlu0 %v451, 32
    %v539 = vpop.permute.xlu0 %538
    %v542 = vpack.c.bf16 %v451, %v447
    %v543 = vpack.c.bf16 %v527, %v525
    %v544 = vpack.c.bf16 %v533, %v531
    %v545 = vpack.c.bf16 %v539, %v537
    %548 = vrot.lane.b32.xlu0 %v488, 96
    %v549 = vpop.permute.xlu0 %548
    %550 = vrot.lane.b32.xlu0 %v491, 96
    %v551 = vpop.permute.xlu0 %550
    %554 = vrot.lane.b32.xlu0 %v488, 64
    %v555 = vpop.permute.xlu0 %554
    %556 = vrot.lane.b32.xlu0 %v491, 64
    %v557 = vpop.permute.xlu0 %556
    %560 = vrot.lane.b32.xlu0 %v488, 32
    %v561 = vpop.permute.xlu0 %560
    %562 = vrot.lane.b32.xlu0 %v491, 32
    %v563 = vpop.permute.xlu0 %562
    %v566 = vpack.c.bf16 %v491, %v488
    %v567 = vpack.c.bf16 %v551, %v549
    %v568 = vpack.c.bf16 %v557, %v555
    %v569 = vpack.c.bf16 %v563, %v561
    %vm570 = vcmask 261120
    %v572 = vsel %vm570, %v518, 0
    %v575 = vsel %vm570, %v542, 0
    %577 = vmatprep.subr.bf16.mxu0 0
    %578 = vmatpush1.bf16.xpose.msra.mxu0 %v575
    %579 = vmatprep.subr.bf16.mxu0 0
    %580 = vmatpush1.bf16.xpose.msra.mxu0 0
    %581 = vmatprep.subr.bf16.mxu0 0
    %582 = vmatpush1.bf16.xpose.msra.mxu0 0
    %583 = vmatprep.subr.bf16.mxu0 0
    %584 = vmatpush1.bf16.xpose.msra.mxu0 0
    %585 = vmatprep.subr.bf16.mxu0 0
    %586 = vmatpush1.bf16.xpose.msra.mxu0 0
    %587 = vmatprep.subr.bf16.mxu0 0
    %588 = vmatpush1.bf16.xpose.msra.mxu0 0
    %589 = vmatprep.subr.bf16.mxu0 0
    %590 = vmatpush1.bf16.xpose.msra.mxu0 0
    %591 = vmatprep.subr.bf16.mxu0 0
    %592 = vmatpush1.bf16.xpose.msra.mxu0 0
    %593 = vmatprep.subr.bf16.mxu0 0
    %594 = vmatpush1.bf16.xpose.msra.mxu0 0
    %595 = vmatprep.subr.bf16.mxu0 0
    %596 = vmatpush1.bf16.xpose.msra.mxu0 0
    %597 = vmatprep.subr.bf16.mxu0 0
    %598 = vmatpush1.bf16.xpose.msra.mxu0 0
    %599 = vmatprep.subr.bf16.mxu0 0
    %600 = vmatpush1.bf16.xpose.msra.mxu0 0
    %601 = vmatprep.subr.bf16.mxu0 0
    %602 = vmatpush1.bf16.xpose.msra.mxu0 0
    %603 = vmatprep.subr.bf16.mxu0 0
    %604 = vmatpush1.bf16.xpose.msra.mxu0 0
    %605 = vmatprep.subr.bf16.mxu0 0
    %606 = vmatpush1.bf16.xpose.msra.mxu0 0
    %607 = vmatprep.subr.bf16.mxu0 0
    %608 = vmatpush1.bf16.xpose.msra.mxu0 0
    %609 = vmatprep.mubr.bf16.mxu0 0
    %610 = vmatmul.mubr.bf16.gmra.mrb[0].mxu0 %v572
    %v611 = vpop.f32.mrb[0].mxu0
    %v612 = vadd.f32 %v496, %v611
    %v613 = vpop.f32.mrb[0].mxu0
    %v614 = vpop.f32.mrb[0].mxu0
    %v615 = vadd.f32 %v497, %v614
    %v616 = vpop.f32.mrb[0].mxu0
    %617 = vdwg.mxu0
    %v619 = vsel %vm570, %v519, 0
    %v622 = vsel %vm570, %v543, 0
    %624 = vmatprep.subr.bf16.mxu0 0
    %625 = vmatpush1.bf16.xpose.msra.mxu0 %v622
    %626 = vmatprep.subr.bf16.mxu0 0
    %627 = vmatpush1.bf16.xpose.msra.mxu0 0
    %628 = vmatprep.subr.bf16.mxu0 0
    %629 = vmatpush1.bf16.xpose.msra.mxu0 0
    %630 = vmatprep.subr.bf16.mxu0 0
    %631 = vmatpush1.bf16.xpose.msra.mxu0 0
    %632 = vmatprep.subr.bf16.mxu0 0
    %633 = vmatpush1.bf16.xpose.msra.mxu0 0
    %634 = vmatprep.subr.bf16.mxu0 0
    %635 = vmatpush1.bf16.xpose.msra.mxu0 0
    %636 = vmatprep.subr.bf16.mxu0 0
    %637 = vmatpush1.bf16.xpose.msra.mxu0 0
    %638 = vmatprep.subr.bf16.mxu0 0
    %639 = vmatpush1.bf16.xpose.msra.mxu0 0
    %640 = vmatprep.subr.bf16.mxu0 0
    %641 = vmatpush1.bf16.xpose.msra.mxu0 0
    %642 = vmatprep.subr.bf16.mxu0 0
    %643 = vmatpush1.bf16.xpose.msra.mxu0 0
    %644 = vmatprep.subr.bf16.mxu0 0
    %645 = vmatpush1.bf16.xpose.msra.mxu0 0
    %646 = vmatprep.subr.bf16.mxu0 0
    %647 = vmatpush1.bf16.xpose.msra.mxu0 0
    %648 = vmatprep.subr.bf16.mxu0 0
    %649 = vmatpush1.bf16.xpose.msra.mxu0 0
    %650 = vmatprep.subr.bf16.mxu0 0
    %651 = vmatpush1.bf16.xpose.msra.mxu0 0
    %652 = vmatprep.subr.bf16.mxu0 0
    %653 = vmatpush1.bf16.xpose.msra.mxu0 0
    %654 = vmatprep.subr.bf16.mxu0 0
    %655 = vmatpush1.bf16.xpose.msra.mxu0 0
    %656 = vmatprep.mubr.bf16.mxu0 0
    %657 = vmatmul.mubr.bf16.gmra.mrb[0].mxu0 %v619
    %v658 = vpop.f32.mrb[0].mxu0
    %v659 = vadd.f32 %v496, %v658
    %v660 = vpop.f32.mrb[0].mxu0
    %v661 = vpop.f32.mrb[0].mxu0
    %v662 = vadd.f32 %v497, %v661
    %v663 = vpop.f32.mrb[0].mxu0
    %664 = vdwg.mxu0
    %v666 = vsel %vm570, %v520, 0
    %v669 = vsel %vm570, %v544, 0
    %671 = vmatprep.subr.bf16.mxu0 0
    %672 = vmatpush1.bf16.xpose.msra.mxu0 %v669
    %673 = vmatprep.subr.bf16.mxu0 0
    %674 = vmatpush1.bf16.xpose.msra.mxu0 0
    %675 = vmatprep.subr.bf16.mxu0 0
    %676 = vmatpush1.bf16.xpose.msra.mxu0 0
    %677 = vmatprep.subr.bf16.mxu0 0
    %678 = vmatpush1.bf16.xpose.msra.mxu0 0
    %679 = vmatprep.subr.bf16.mxu0 0
    %680 = vmatpush1.bf16.xpose.msra.mxu0 0
    %681 = vmatprep.subr.bf16.mxu0 0
    %682 = vmatpush1.bf16.xpose.msra.mxu0 0
    %683 = vmatprep.subr.bf16.mxu0 0
    %684 = vmatpush1.bf16.xpose.msra.mxu0 0
    %685 = vmatprep.subr.bf16.mxu0 0
    %686 = vmatpush1.bf16.xpose.msra.mxu0 0
    %687 = vmatprep.subr.bf16.mxu0 0
    %688 = vmatpush1.bf16.xpose.msra.mxu0 0
    %689 = vmatprep.subr.bf16.mxu0 0
    %690 = vmatpush1.bf16.xpose.msra.mxu0 0
    %691 = vmatprep.subr.bf16.mxu0 0
    %692 = vmatpush1.bf16.xpose.msra.mxu0 0
    %693 = vmatprep.subr.bf16.mxu0 0
    %694 = vmatpush1.bf16.xpose.msra.mxu0 0
    %695 = vmatprep.subr.bf16.mxu0 0
    %696 = vmatpush1.bf16.xpose.msra.mxu0 0
    %697 = vmatprep.subr.bf16.mxu0 0
    %698 = vmatpush1.bf16.xpose.msra.mxu0 0
    %699 = vmatprep.subr.bf16.mxu0 0
    %700 = vmatpush1.bf16.xpose.msra.mxu0 0
    %701 = vmatprep.subr.bf16.mxu0 0
    %702 = vmatpush1.bf16.xpose.msra.mxu0 0
    %703 = vmatprep.mubr.bf16.mxu0 0
    %704 = vmatmul.mubr.bf16.gmra.mrb[0].mxu0 %v666
    %v705 = vpop.f32.mrb[0].mxu0
    %v706 = vadd.f32 %v496, %v705
    %v707 = vpop.f32.mrb[0].mxu0
    %v708 = vpop.f32.mrb[0].mxu0
    %v709 = vadd.f32 %v497, %v708
    %v710 = vpop.f32.mrb[0].mxu0
    %711 = vdwg.mxu0
    %v713 = vsel %vm570, %v521, 0
    %v716 = vsel %vm570, %v545, 0
    %718 = vmatprep.subr.bf16.mxu0 0
    %719 = vmatpush1.bf16.xpose.msra.mxu0 %v716
    %720 = vmatprep.subr.bf16.mxu0 0
    %721 = vmatpush1.bf16.xpose.msra.mxu0 0
    %722 = vmatprep.subr.bf16.mxu0 0
    %723 = vmatpush1.bf16.xpose.msra.mxu0 0
    %724 = vmatprep.subr.bf16.mxu0 0
    %725 = vmatpush1.bf16.xpose.msra.mxu0 0
    %726 = vmatprep.subr.bf16.mxu0 0
    %727 = vmatpush1.bf16.xpose.msra.mxu0 0
    %728 = vmatprep.subr.bf16.mxu0 0
    %729 = vmatpush1.bf16.xpose.msra.mxu0 0
    %730 = vmatprep.subr.bf16.mxu0 0
    %731 = vmatpush1.bf16.xpose.msra.mxu0 0
    %732 = vmatprep.subr.bf16.mxu0 0
    %733 = vmatpush1.bf16.xpose.msra.mxu0 0
    %734 = vmatprep.subr.bf16.mxu0 0
    %735 = vmatpush1.bf16.xpose.msra.mxu0 0
    %736 = vmatprep.subr.bf16.mxu0 0
    %737 = vmatpush1.bf16.xpose.msra.mxu0 0
    %738 = vmatprep.subr.bf16.mxu0 0
    %739 = vmatpush1.bf16.xpose.msra.mxu0 0
    %740 = vmatprep.subr.bf16.mxu0 0
    %741 = vmatpush1.bf16.xpose.msra.mxu0 0
    %742 = vmatprep.subr.bf16.mxu0 0
    %743 = vmatpush1.bf16.xpose.msra.mxu0 0
    %744 = vmatprep.subr.bf16.mxu0 0
    %745 = vmatpush1.bf16.xpose.msra.mxu0 0
    %746 = vmatprep.subr.bf16.mxu0 0
    %747 = vmatpush1.bf16.xpose.msra.mxu0 0
    %748 = vmatprep.subr.bf16.mxu0 0
    %749 = vmatpush1.bf16.xpose.msra.mxu0 0
    %750 = vmatprep.mubr.bf16.mxu0 0
    %751 = vmatmul.mubr.bf16.gmra.mrb[0].mxu0 %v713
    %v752 = vpop.f32.mrb[0].mxu0
    %v753 = vadd.f32 %v496, %v752
    %v754 = vpop.f32.mrb[0].mxu0
    %v755 = vpop.f32.mrb[0].mxu0
    %v756 = vadd.f32 %v497, %v755
    %v757 = vpop.f32.mrb[0].mxu0
    %758 = vdwg.mxu0
    %vm759 = vcmask 130048
    %v760 = vsel %vm759, %v612, -inf
    %761 = vmax.xlane.f32.xlu0 %v760
    %v762 = vpop.xlane.xlu0 %761
    %v763 = vsel %vm759, %v615, -inf
    %764 = vmax.xlane.f32.xlu0 %v763
    %v765 = vpop.xlane.xlu0 %764
    %v766 = vsel %vm759, %v659, -inf
    %767 = vmax.xlane.f32.xlu0 %v766
    %v768 = vpop.xlane.xlu0 %767
    %v769 = vsel %vm759, %v662, -inf
    %770 = vmax.xlane.f32.xlu0 %v769
    %v771 = vpop.xlane.xlu0 %770
    %v772 = vsel %vm759, %v706, -inf
    %773 = vmax.xlane.f32.xlu0 %v772
    %v774 = vpop.xlane.xlu0 %773
    %v775 = vsel %vm759, %v709, -inf
    %776 = vmax.xlane.f32.xlu0 %v775
    %v777 = vpop.xlane.xlu0 %776
    %v778 = vsel %vm759, %v753, -inf
    %779 = vmax.xlane.f32.xlu0 %v778
    %v780 = vpop.xlane.xlu0 %779
    %v781 = vsel %vm759, %v756, -inf
    %782 = vmax.xlane.f32.xlu0 %v781
    %v783 = vpop.xlane.xlu0 %782
    %v784 = vsub.f32 %v612, %v762
    %v785 = vsub.f32 %v615, %v765
    %v786 = vsub.f32 %v659, %v768
    %v787 = vsub.f32 %v662, %v771
    %v788 = vsub.f32 %v706, %v774
    %v789 = vsub.f32 %v709, %v777
    %v790 = vsub.f32 %v753, %v780
    %v791 = vsub.f32 %v756, %v783
    %v792 = vmul.f32 %v784, 1.442695
    %v793 = vpow.pop %v792
    %v794 = vmul.f32 %v785, 1.442695
    %v795 = vpow.pop %v794
    %v796 = vmul.f32 %v786, 1.442695
    %v797 = vpow.pop %v796
    %v798 = vmul.f32 %v787, 1.442695
    %v799 = vpow.pop %v798
    %v800 = vmul.f32 %v788, 1.442695
    %v801 = vpow.pop %v800
    %v802 = vmul.f32 %v789, 1.442695
    %v803 = vpow.pop %v802
    %v804 = vmul.f32 %v790, 1.442695
    %v805 = vpow.pop %v804
    %v806 = vmul.f32 %v791, 1.442695
    %v807 = vpow.pop %v806
    %v808 = vsel %vm759, %v793, 0.0
    %809 = vadd.xlane.f32.xlu0 %v808
    %v810 = vpop.xlane.xlu0 %809
    %v811 = vsel %vm759, %v795, 0.0
    %812 = vadd.xlane.f32.xlu0 %v811
    %v813 = vpop.xlane.xlu0 %812
    %v814 = vsel %vm759, %v797, 0.0
    %815 = vadd.xlane.f32.xlu0 %v814
    %v816 = vpop.xlane.xlu0 %815
    %v817 = vsel %vm759, %v799, 0.0
    %818 = vadd.xlane.f32.xlu0 %v817
    %v819 = vpop.xlane.xlu0 %818
    %v820 = vsel %vm759, %v801, 0.0
    %821 = vadd.xlane.f32.xlu0 %v820
    %v822 = vpop.xlane.xlu0 %821
    %v823 = vsel %vm759, %v803, 0.0
    %824 = vadd.xlane.f32.xlu0 %v823
    %v825 = vpop.xlane.xlu0 %824
    %v826 = vsel %vm759, %v805, 0.0
    %827 = vadd.xlane.f32.xlu0 %v826
    %v828 = vpop.xlane.xlu0 %827
    %v829 = vsel %vm759, %v807, 0.0
    %830 = vadd.xlane.f32.xlu0 %v829
    %v831 = vpop.xlane.xlu0 %830
    %v832 = vpack.c.bf16 %v795, %v793
    %v833 = vpack.c.bf16 %v799, %v797
    %v834 = vpack.c.bf16 %v803, %v801
    %v835 = vpack.c.bf16 %v807, %v805
    %v837 = vsel %vm759, %v832, 0
    %839 = vmatprep.subr.bf16.mxu0 0
    %840 = vmatpush1.bf16.msra.mxu0 %v566
    %841 = vmatprep.subr.bf16.mxu0 0
    %842 = vmatpush1.bf16.msra.mxu0 0
    %843 = vmatprep.subr.bf16.mxu0 0
    %844 = vmatpush1.bf16.msra.mxu0 0
    %845 = vmatprep.subr.bf16.mxu0 0
    %846 = vmatpush1.bf16.msra.mxu0 0
    %847 = vmatprep.subr.bf16.mxu0 0
    %848 = vmatpush1.bf16.msra.mxu0 0
    %849 = vmatprep.subr.bf16.mxu0 0
    %850 = vmatpush1.bf16.msra.mxu0 0
    %851 = vmatprep.subr.bf16.mxu0 0
    %852 = vmatpush1.bf16.msra.mxu0 0
    %853 = vmatprep.subr.bf16.mxu0 0
    %854 = vmatpush1.bf16.msra.mxu0 0
    %855 = vmatprep.subr.bf16.mxu0 0
    %856 = vmatpush1.bf16.msra.mxu0 0
    %857 = vmatprep.subr.bf16.mxu0 0
    %858 = vmatpush1.bf16.msra.mxu0 0
    %859 = vmatprep.subr.bf16.mxu0 0
    %860 = vmatpush1.bf16.msra.mxu0 0
    %861 = vmatprep.subr.bf16.mxu0 0
    %862 = vmatpush1.bf16.msra.mxu0 0
    %863 = vmatprep.subr.bf16.mxu0 0
    %864 = vmatpush1.bf16.msra.mxu0 0
    %865 = vmatprep.subr.bf16.mxu0 0
    %866 = vmatpush1.bf16.msra.mxu0 0
    %867 = vmatprep.subr.bf16.mxu0 0
    %868 = vmatpush1.bf16.msra.mxu0 0
    %869 = vmatprep.subr.bf16.mxu0 0
    %870 = vmatpush1.bf16.msra.mxu0 0
    %871 = vmatprep.mubr.bf16.mxu0 0
    %872 = vmatmul.mubr.bf16.gmra.mrb[0].mxu0 %v837
    %v873 = vpop.f32.mrb[0].mxu0
    %v874 = vadd.f32 0.0, %v873
    %v875 = vpop.f32.mrb[0].mxu0
    %v876 = vpop.f32.mrb[0].mxu0
    %v877 = vadd.f32 0.0, %v876
    %v878 = vpop.f32.mrb[0].mxu0
    %879 = vdwg.mxu0
    %v881 = vsel %vm759, %v833, 0
    %883 = vmatprep.subr.bf16.mxu0 0
    %884 = vmatpush1.bf16.msra.mxu0 %v567
    %885 = vmatprep.subr.bf16.mxu0 0
    %886 = vmatpush1.bf16.msra.mxu0 0
    %887 = vmatprep.subr.bf16.mxu0 0
    %888 = vmatpush1.bf16.msra.mxu0 0
    %889 = vmatprep.subr.bf16.mxu0 0
    %890 = vmatpush1.bf16.msra.mxu0 0
    %891 = vmatprep.subr.bf16.mxu0 0
    %892 = vmatpush1.bf16.msra.mxu0 0
    %893 = vmatprep.subr.bf16.mxu0 0
    %894 = vmatpush1.bf16.msra.mxu0 0
    %895 = vmatprep.subr.bf16.mxu0 0
    %896 = vmatpush1.bf16.msra.mxu0 0
    %897 = vmatprep.subr.bf16.mxu0 0
    %898 = vmatpush1.bf16.msra.mxu0 0
    %899 = vmatprep.subr.bf16.mxu0 0
    %900 = vmatpush1.bf16.msra.mxu0 0
    %901 = vmatprep.subr.bf16.mxu0 0
    %902 = vmatpush1.bf16.msra.mxu0 0
    %903 = vmatprep.subr.bf16.mxu0 0
    %904 = vmatpush1.bf16.msra.mxu0 0
    %905 = vmatprep.subr.bf16.mxu0 0
    %906 = vmatpush1.bf16.msra.mxu0 0
    %907 = vmatprep.subr.bf16.mxu0 0
    %908 = vmatpush1.bf16.msra.mxu0 0
    %909 = vmatprep.subr.bf16.mxu0 0
    %910 = vmatpush1.bf16.msra.mxu0 0
    %911 = vmatprep.subr.bf16.mxu0 0
    %912 = vmatpush1.bf16.msra.mxu0 0
    %913 = vmatprep.subr.bf16.mxu0 0
    %914 = vmatpush1.bf16.msra.mxu0 0
    %915 = vmatprep.mubr.bf16.mxu0 0
    %916 = vmatmul.mubr.bf16.gmra.mrb[0].mxu0 %v881
    %v917 = vpop.f32.mrb[0].mxu0
    %v918 = vadd.f32 0.0, %v917
    %v919 = vpop.f32.mrb[0].mxu0
    %v920 = vpop.f32.mrb[0].mxu0
    %v921 = vadd.f32 0.0, %v920
    %v922 = vpop.f32.mrb[0].mxu0
    %923 = vdwg.mxu0
    %v925 = vsel %vm759, %v834, 0
    %927 = vmatprep.subr.bf16.mxu0 0
    %928 = vmatpush1.bf16.msra.mxu0 %v568
    %929 = vmatprep.subr.bf16.mxu0 0
    %930 = vmatpush1.bf16.msra.mxu0 0
    %931 = vmatprep.subr.bf16.mxu0 0
    %932 = vmatpush1.bf16.msra.mxu0 0
    %933 = vmatprep.subr.bf16.mxu0 0
    %934 = vmatpush1.bf16.msra.mxu0 0
    %935 = vmatprep.subr.bf16.mxu0 0
    %936 = vmatpush1.bf16.msra.mxu0 0
    %937 = vmatprep.subr.bf16.mxu0 0
    %938 = vmatpush1.bf16.msra.mxu0 0
    %939 = vmatprep.subr.bf16.mxu0 0
    %940 = vmatpush1.bf16.msra.mxu0 0
    %941 = vmatprep.subr.bf16.mxu0 0
    %942 = vmatpush1.bf16.msra.mxu0 0
    %943 = vmatprep.subr.bf16.mxu0 0
    %944 = vmatpush1.bf16.msra.mxu0 0
    %945 = vmatprep.subr.bf16.mxu0 0
    %946 = vmatpush1.bf16.msra.mxu0 0
    %947 = vmatprep.subr.bf16.mxu0 0
    %948 = vmatpush1.bf16.msra.mxu0 0
    %949 = vmatprep.subr.bf16.mxu0 0
    %950 = vmatpush1.bf16.msra.mxu0 0
    %951 = vmatprep.subr.bf16.mxu0 0
    %952 = vmatpush1.bf16.msra.mxu0 0
    %953 = vmatprep.subr.bf16.mxu0 0
    %954 = vmatpush1.bf16.msra.mxu0 0
    %955 = vmatprep.subr.bf16.mxu0 0
    %956 = vmatpush1.bf16.msra.mxu0 0
    %957 = vmatprep.subr.bf16.mxu0 0
    %958 = vmatpush1.bf16.msra.mxu0 0
    %959 = vmatprep.mubr.bf16.mxu0 0
    %960 = vmatmul.mubr.bf16.gmra.mrb[0].mxu0 %v925
    %v961 = vpop.f32.mrb[0].mxu0
    %v962 = vadd.f32 0.0, %v961
    %v963 = vpop.f32.mrb[0].mxu0
    %v964 = vpop.f32.mrb[0].mxu0
    %v965 = vadd.f32 0.0, %v964
    %v966 = vpop.f32.mrb[0].mxu0
    %967 = vdwg.mxu0
    %v969 = vsel %vm759, %v835, 0
    %971 = vmatprep.subr.bf16.mxu0 0
    %972 = vmatpush1.bf16.msra.mxu0 %v569
    %973 = vmatprep.subr.bf16.mxu0 0
    %974 = vmatpush1.bf16.msra.mxu0 0
    %975 = vmatprep.subr.bf16.mxu0 0
    %976 = vmatpush1.bf16.msra.mxu0 0
    %977 = vmatprep.subr.bf16.mxu0 0
    %978 = vmatpush1.bf16.msra.mxu0 0
    %979 = vmatprep.subr.bf16.mxu0 0
    %980 = vmatpush1.bf16.msra.mxu0 0
    %981 = vmatprep.subr.bf16.mxu0 0
    %982 = vmatpush1.bf16.msra.mxu0 0
    %983 = vmatprep.subr.bf16.mxu0 0
    %984 = vmatpush1.bf16.msra.mxu0 0
    %985 = vmatprep.subr.bf16.mxu0 0
    %986 = vmatpush1.bf16.msra.mxu0 0
    %987 = vmatprep.subr.bf16.mxu0 0
    %988 = vmatpush1.bf16.msra.mxu0 0
    %989 = vmatprep.subr.bf16.mxu0 0
    %990 = vmatpush1.bf16.msra.mxu0 0
    %991 = vmatprep.subr.bf16.mxu0 0
    %992 = vmatpush1.bf16.msra.mxu0 0
    %993 = vmatprep.subr.bf16.mxu0 0
    %994 = vmatpush1.bf16.msra.mxu0 0
    %995 = vmatprep.subr.bf16.mxu0 0
    %996 = vmatpush1.bf16.msra.mxu0 0
    %997 = vmatprep.subr.bf16.mxu0 0
    %998 = vmatpush1.bf16.msra.mxu0 0
    %999 = vmatprep.subr.bf16.mxu0 0
    %1000 = vmatpush1.bf16.msra.mxu0 0
    %1001 = vmatprep.subr.bf16.mxu0 0
    %1002 = vmatpush1.bf16.msra.mxu0 0
    %1003 = vmatprep.mubr.bf16.mxu0 0
    %1004 = vmatmul.mubr.bf16.gmra.mrb[0].mxu0 %v969
    %v1005 = vpop.f32.mrb[0].mxu0
    %v1006 = vadd.f32 0.0, %v1005
    %v1007 = vpop.f32.mrb[0].mxu0
    %v1008 = vpop.f32.mrb[0].mxu0
    %v1009 = vadd.f32 0.0, %v1008
    %v1010 = vpop.f32.mrb[0].mxu0
    %1011 = vdwg.mxu0
    %v1012 = vrcp.pop %v810
    %v1013 = vrcp.pop %v813
    %v1014 = vrcp.pop %v816
    %v1015 = vrcp.pop %v819
    %v1016 = vrcp.pop %v822
    %v1017 = vrcp.pop %v825
    %v1018 = vrcp.pop %v828
    %v1019 = vrcp.pop %v831
    %v1020 = vmul.f32 %v874, %v1012
    %v1021 = vmul.f32 %v877, %v1013
    %v1022 = vmul.f32 %v918, %v1014
    %v1023 = vmul.f32 %v921, %v1015
    %v1024 = vmul.f32 %v962, %v1016
    %v1025 = vmul.f32 %v965, %v1017
    %v1026 = vmul.f32 %v1006, %v1018
    %v1027 = vmul.f32 %v1009, %v1019
    %1030 = vrot.lane.b32.xlu0 %v1022, 32
    %v1031 = vpop.permute.xlu0 %1030
    %1032 = vrot.lane.b32.xlu0 %v1023, 32
    %v1033 = vpop.permute.xlu0 %1032
    %1038 = vrot.lane.b32.xlu0 %v1024, 64
    %v1039 = vpop.permute.xlu0 %1038
    %1040 = vrot.lane.b32.xlu0 %v1025, 64
    %v1041 = vpop.permute.xlu0 %1040
    %1046 = vrot.lane.b32.xlu0 %v1026, 96
    %v1047 = vpop.permute.xlu0 %1046
    %1048 = vrot.lane.b32.xlu0 %v1027, 96
    %v1049 = vpop.permute.xlu0 %1048
    %v1052 = vsel %vm570, %v1020, %v1031
    %v1053 = vsel %vm570, %v1021, %v1033
    %vm1054 = vcmask 523264
    %v1055 = vsel %vm1054, %v1052, %v1039
    %v1056 = vsel %vm1054, %v1053, %v1041
    %vm1057 = vcmask 785408
    %v1058 = vsel %vm1057, %v1055, %v1047
    %v1059 = vsel %vm1057, %v1056, %v1049
    %v1060 = vpack.c.bf16 %v1059, %v1058
    %v1061 = vld [vmem:[#allocation11] sm:$0xf]
    %v1062 = vld [vmem:[#allocation11 + $0x4] sm:$0xf]
    %v1063 = vld [vmem:[#allocation11 + $0x8] sm:$0xf]
    %v1064 = vld [vmem:[#allocation11 + $0xc] sm:$0xf]
    %v1065 = vld [vmem:[#allocation11 + $0x10] sm:$0xf]
    %v1066 = vld [vmem:[#allocation11 + $0x14] sm:$0xf]
    %v1067 = vld [vmem:[#allocation11 + $0x18] sm:$0xf]
    %v1068 = vld [vmem:[#allocation11 + $0x1c] sm:$0xf]
    %v1069 = vld [vmem:[#allocation11 + $0x20] sm:$0xf]
    %v1070 = vld [vmem:[#allocation11 + $0x24] sm:$0xf]
    %v1071 = vld [vmem:[#allocation11 + $0x28] sm:$0xf]
    %v1072 = vld [vmem:[#allocation11 + $0x2c] sm:$0xf]
    %v1073 = vld [vmem:[#allocation11 + $0x30] sm:$0xf]
    %v1074 = vld [vmem:[#allocation11 + $0x34] sm:$0xf]
    %v1075 = vld [vmem:[#allocation11 + $0x38] sm:$0xf]
    %v1076 = vld [vmem:[#allocation11 + $0x3c] sm:$0xf]
    %v1077 = vld [vmem:[%s7] sm:$0x1]
    %v1079 = vlaneseq
    %v1080 = vshrl.u32 %v1079, 7
    %v1081 = vsub.s32 0, %v1080
    %v1082 = vrot.slane %v1077, %v1081
    %v1100 = vunpack.c.l.b16 %v1061
    %v1101 = vunpack.c.l.b16 %v1062
    %v1102 = vunpack.c.l.b16 %v1063
    %v1103 = vunpack.c.l.b16 %v1064
    %v1104 = vunpack.c.l.b16 %v1065
    %v1105 = vunpack.c.l.b16 %v1066
    %v1106 = vunpack.c.l.b16 %v1067
    %v1107 = vunpack.c.l.b16 %v1068
    %v1108 = vunpack.c.l.b16 %v1069
    %v1109 = vunpack.c.l.b16 %v1070
    %v1110 = vunpack.c.l.b16 %v1071
    %v1111 = vunpack.c.l.b16 %v1072
    %v1112 = vunpack.c.l.b16 %v1073
    %v1113 = vunpack.c.l.b16 %v1074
    %v1114 = vunpack.c.l.b16 %v1075
    %v1115 = vunpack.c.l.b16 %v1076
    %v1116 = vpack.c.b16 %v1101, %v1100
    %v1117 = vpack.c.b16 %v1103, %v1102
    %v1118 = vpack.c.b16 %v1105, %v1104
    %v1119 = vpack.c.b16 %v1107, %v1106
    %v1120 = vpack.c.b16 %v1109, %v1108
    %v1121 = vpack.c.b16 %v1111, %v1110
    %v1122 = vpack.c.b16 %v1113, %v1112
    %v1123 = vpack.c.b16 %v1115, %v1114
    %1132 = vmatprep.subr.bf16.mxu0 0
    %1133 = vmatpush1.bf16.msra.mxu0 %v1116
    %1134 = vmatprep.subr.bf16.mxu0 0
    %1135 = vmatpush1.bf16.msra.mxu0 %v1117
    %1136 = vmatprep.subr.bf16.mxu0 0
    %1137 = vmatpush1.bf16.msra.mxu0 %v1118
    %1138 = vmatprep.subr.bf16.mxu0 0
    %1139 = vmatpush1.bf16.msra.mxu0 %v1119
    %1140 = vmatprep.subr.bf16.mxu0 0
    %1141 = vmatpush1.bf16.msra.mxu0 %v1120
    %1142 = vmatprep.subr.bf16.mxu0 0
    %1143 = vmatpush1.bf16.msra.mxu0 %v1121
    %1144 = vmatprep.subr.bf16.mxu0 0
    %1145 = vmatpush1.bf16.msra.mxu0 %v1122
    %1146 = vmatprep.subr.bf16.mxu0 0
    %1147 = vmatpush1.bf16.msra.mxu0 %v1123
    %1148 = vmatprep.subr.bf16.mxu0 0
    %1149 = vmatpush1.bf16.msra.mxu0 0
    %1150 = vmatprep.subr.bf16.mxu0 0
    %1151 = vmatpush1.bf16.msra.mxu0 0
    %1152 = vmatprep.subr.bf16.mxu0 0
    %1153 = vmatpush1.bf16.msra.mxu0 0
    %1154 = vmatprep.subr.bf16.mxu0 0
    %1155 = vmatpush1.bf16.msra.mxu0 0
    %1156 = vmatprep.subr.bf16.mxu0 0
    %1157 = vmatpush1.bf16.msra.mxu0 0
    %1158 = vmatprep.subr.bf16.mxu0 0
    %1159 = vmatpush1.bf16.msra.mxu0 0
    %1160 = vmatprep.subr.bf16.mxu0 0
    %1161 = vmatpush1.bf16.msra.mxu0 0
    %1162 = vmatprep.subr.bf16.mxu0 0
    %1163 = vmatpush1.bf16.msra.mxu0 0
    %1164 = vmatprep.mubr.bf16.mxu0 0
    %1165 = vmatmul.mubr.bf16.gmra.mrb[0].mxu0 %v1060
    %v1166 = vpop.f32.mrb[0].mxu0
    %v1167 = vadd.f32 %v1082, %v1166
    %v1168 = vpop.f32.mrb[0].mxu0
    %v1169 = vpop.f32.mrb[0].mxu0
    %v1170 = vadd.f32 %v1082, %v1169
    %v1171 = vpop.f32.mrb[0].mxu0
    %1172 = vdwg.mxu0
    %v1173 = vmul.f32 %v228, 2.0
    %v1174 = vmul.f32 %v229, 2.0
    %v1175 = vadd.f32 %v1173, %v1167
    %v1176 = vadd.f32 %v1174, %v1170
    %1177 = vadd.xlane.f32.xlu0 %v1175
    %v1178 = vpop.xlane.xlu0 %1177
    %1179 = vadd.xlane.f32.xlu0 %v1176
    %v1180 = vpop.xlane.xlu0 %1179
    %v1181 = vrcp.pop 128.0
    %v1182 = vmul.f32 %v1178, %v1181
    %v1183 = vmul.f32 %v1180, %v1181
    %v1184 = vmul.f32 %v1175, %v1175
    %v1185 = vmul.f32 %v1176, %v1176
    %1186 = vadd.xlane.f32.xlu0 %v1184
    %v1187 = vpop.xlane.xlu0 %1186
    %1188 = vadd.xlane.f32.xlu0 %v1185
    %v1189 = vpop.xlane.xlu0 %1188
    %v1190 = vmul.f32 %v1187, %v1181
    %v1191 = vmul.f32 %v1189, %v1181
    %v1192 = vmul.f32 %v1182, %v1182
    %v1193 = vmul.f32 %v1183, %v1183
    %v1194 = vsub.f32 %v1190, %v1192
    %v1195 = vsub.f32 %v1191, %v1193
    %v1196 = vsub.f32 %v1175, %v1182
    %v1197 = vsub.f32 %v1176, %v1183
    %v1198 = vadd.f32 %v1194, 1e-05
    %v1199 = vadd.f32 %v1195, 1e-05
    %v1200 = vrsqrt.pop %v1198
    %v1201 = vrsqrt.pop %v1199
    %v1202 = vmul.f32 %v1196, %v1200
    %v1203 = vmul.f32 %v1197, %v1201
    %v1204 = vld [vmem:[%s18] sm:$0x1]
    %v1206 = vlaneseq
    %v1207 = vshrl.u32 %v1206, 7
    %v1208 = vsub.s32 0, %v1207
    %v1209 = vrot.slane %v1204, %v1208
    %v1211 = vmul.f32 %v1209, %v1202
    %v1212 = vmul.f32 %v1209, %v1203
    %v1213 = vld [vmem:[%s19] sm:$0x1]
    %v1215 = vlaneseq
    %v1216 = vshrl.u32 %v1215, 7
    %v1217 = vsub.s32 0, %v1216
    %v1218 = vrot.slane %v1213, %v1217
    %v1220 = vadd.f32 %v1211, %v1218
    %v1221 = vadd.f32 %v1212, %v1218
    %v1222 = vpack.c.bf16 %v1221, %v1220
    %v1223 = vld [vmem:[#allocation13] sm:$0xf]
    %v1224 = vld [vmem:[#allocation13 + $0x4] sm:$0xf]
    %v1225 = vld [vmem:[#allocation13 + $0x8] sm:$0xf]
    %v1226 = vld [vmem:[#allocation13 + $0xc] sm:$0xf]
    %v1227 = vld [vmem:[#allocation13 + $0x10] sm:$0xf]
    %v1228 = vld [vmem:[#allocation13 + $0x14] sm:$0xf]
    %v1229 = vld [vmem:[#allocation13 + $0x18] sm:$0xf]
    %v1230 = vld [vmem:[#allocation13 + $0x1c] sm:$0xf]
    %v1231 = vld [vmem:[#allocation13 + $0x20] sm:$0xf]
    %v1232 = vld [vmem:[#allocation13 + $0x24] sm:$0xf]
    %v1233 = vld [vmem:[#allocation13 + $0x28] sm:$0xf]
    %v1234 = vld [vmem:[#allocation13 + $0x2c] sm:$0xf]
    %v1235 = vld [vmem:[#allocation13 + $0x30] sm:$0xf]
    %v1236 = vld [vmem:[#allocation13 + $0x34] sm:$0xf]
    %v1237 = vld [vmem:[#allocation13 + $0x38] sm:$0xf]
    %v1238 = vld [vmem:[#allocation13 + $0x3c] sm:$0xf]
    %v1239 = vld [vmem:[%s9] sm:$0x1]
    %v1241 = vlaneseq
    %v1242 = vshrl.u32 %v1241, 7
    %v1243 = vsub.s32 0, %v1242
    %v1244 = vrot.slane %v1239, %v1243
    %v1262 = vunpack.c.l.b16 %v1223
    %v1263 = vunpack.c.l.b16 %v1224
    %v1264 = vunpack.c.l.b16 %v1225
    %v1265 = vunpack.c.l.b16 %v1226
    %v1266 = vunpack.c.l.b16 %v1227
    %v1267 = vunpack.c.l.b16 %v1228
    %v1268 = vunpack.c.l.b16 %v1229
    %v1269 = vunpack.c.l.b16 %v1230
    %v1270 = vunpack.c.l.b16 %v1231
    %v1271 = vunpack.c.l.b16 %v1232
    %v1272 = vunpack.c.l.b16 %v1233
    %v1273 = vunpack.c.l.b16 %v1234
    %v1274 = vunpack.c.l.b16 %v1235
    %v1275 = vunpack.c.l.b16 %v1236
    %v1276 = vunpack.c.l.b16 %v1237
    %v1277 = vunpack.c.l.b16 %v1238
    %v1278 = vpack.c.b16 %v1263, %v1262
    %v1279 = vpack.c.b16 %v1265, %v1264
    %v1280 = vpack.c.b16 %v1267, %v1266
    %v1281 = vpack.c.b16 %v1269, %v1268
    %v1282 = vpack.c.b16 %v1271, %v1270
    %v1283 = vpack.c.b16 %v1273, %v1272
    %v1284 = vpack.c.b16 %v1275, %v1274
    %v1285 = vpack.c.b16 %v1277, %v1276
    %1294 = vmatprep.subr.bf16.mxu0 0
    %1295 = vmatpush1.bf16.msra.mxu0 %v1278
    %1296 = vmatprep.subr.bf16.mxu0 0
    %1297 = vmatpush1.bf16.msra.mxu0 %v1279
    %1298 = vmatprep.subr.bf16.mxu0 0
    %1299 = vmatpush1.bf16.msra.mxu0 %v1280
    %1300 = vmatprep.subr.bf16.mxu0 0
    %1301 = vmatpush1.bf16.msra.mxu0 %v1281
    %1302 = vmatprep.subr.bf16.mxu0 0
    %1303 = vmatpush1.bf16.msra.mxu0 %v1282
    %1304 = vmatprep.subr.bf16.mxu0 0
    %1305 = vmatpush1.bf16.msra.mxu0 %v1283
    %1306 = vmatprep.subr.bf16.mxu0 0
    %1307 = vmatpush1.bf16.msra.mxu0 %v1284
    %1308 = vmatprep.subr.bf16.mxu0 0
    %1309 = vmatpush1.bf16.msra.mxu0 %v1285
    %1310 = vmatprep.subr.bf16.mxu0 0
    %1311 = vmatpush1.bf16.msra.mxu0 0
    %1312 = vmatprep.subr.bf16.mxu0 0
    %1313 = vmatpush1.bf16.msra.mxu0 0
    %1314 = vmatprep.subr.bf16.mxu0 0
    %1315 = vmatpush1.bf16.msra.mxu0 0
    %1316 = vmatprep.subr.bf16.mxu0 0
    %1317 = vmatpush1.bf16.msra.mxu0 0
    %1318 = vmatprep.subr.bf16.mxu0 0
    %1319 = vmatpush1.bf16.msra.mxu0 0
    %1320 = vmatprep.subr.bf16.mxu0 0
    %1321 = vmatpush1.bf16.msra.mxu0 0
    %1322 = vmatprep.subr.bf16.mxu0 0
    %1323 = vmatpush1.bf16.msra.mxu0 0
    %1324 = vmatprep.subr.bf16.mxu0 0
    %1325 = vmatpush1.bf16.msra.mxu0 0
    %1326 = vmatprep.mubr.bf16.mxu0 0
    %1327 = vmatmul.mubr.bf16.gmra.mrb[0].mxu0 %v1222
    %v1328 = vpop.f32.mrb[0].mxu0
    %v1329 = vadd.f32 %v1244, %v1328
    %v1330 = vpop.f32.mrb[0].mxu0
    %v1331 = vpop.f32.mrb[0].mxu0
    %v1332 = vadd.f32 %v1244, %v1331
    %v1333 = vpop.f32.mrb[0].mxu0
    %1334 = vdwg.mxu0
    %v1335 = vmul.f32 %v1329, 0.17677669
    %v1336 = vmul.f32 %v1332, 0.17677669
    %v1337 = vpack.c.bf16 %v231, %v230
    %v1338 = vld [vmem:[#allocation14] sm:$0xff]
    %v1339 = vld [vmem:[#allocation14 + $0x8] sm:$0xff]
    %v1340 = vld [vmem:[#allocation14 + $0x10] sm:$0xff]
    %v1341 = vld [vmem:[#allocation14 + $0x18] sm:$0xff]
    %v1342 = vld [vmem:[#allocation14 + $0x20] sm:$0xff]
    %v1343 = vld [vmem:[#allocation14 + $0x28] sm:$0xff]
    %v1344 = vld [vmem:[#allocation14 + $0x30] sm:$0xff]
    %v1345 = vld [vmem:[#allocation14 + $0x38] sm:$0xff]
    %v1346 = vld [vmem:[#allocation14 + $0x40] sm:$0xff]
    %v1347 = vld [vmem:[#allocation14 + $0x48] sm:$0xff]
    %v1348 = vld [vmem:[#allocation14 + $0x50] sm:$0xff]
    %v1349 = vld [vmem:[#allocation14 + $0x58] sm:$0xff]
    %v1350 = vld [vmem:[#allocation14 + $0x60] sm:$0xff]
    %v1351 = vld [vmem:[#allocation14 + $0x68] sm:$0xff]
    %v1352 = vld [vmem:[#allocation14 + $0x70] sm:$0xff]
    %v1353 = vld [vmem:[#allocation14 + $0x78] sm:$0xff]
    %v1354 = vld [vmem:[%s11] sm:$0x3]
    %v1356 = vlaneseq
    %v1357 = vshrl.u32 %v1356, 7
    %v1358 = vsub.s32 0, %v1357
    %v1359 = vrot.slane %v1354, %v1358
    %v1360 = vlaneseq
    %v1361 = vshrl.u32 %v1360, 7
    %v1362 = vsub.s32 1, %v1361
    %v1363 = vrot.slane %v1354, %v1362
    %v1382 = vunpack.c.l.b16 %v1338
    %v1383 = vunpack.c.h.b16 %v1338
    %v1384 = vunpack.c.l.b16 %v1339
    %v1385 = vunpack.c.h.b16 %v1339
    %v1386 = vunpack.c.l.b16 %v1340
    %v1387 = vunpack.c.h.b16 %v1340
    %v1388 = vunpack.c.l.b16 %v1341
    %v1389 = vunpack.c.h.b16 %v1341
    %v1390 = vunpack.c.l.b16 %v1342
    %v1391 = vunpack.c.h.b16 %v1342
    %v1392 = vunpack.c.l.b16 %v1343
    %v1393 = vunpack.c.h.b16 %v1343
    %v1394 = vunpack.c.l.b16 %v1344
    %v1395 = vunpack.c.h.b16 %v1344
    %v1396 = vunpack.c.l.b16 %v1345
    %v1397 = vunpack.c.h.b16 %v1345
    %v1398 = vunpack.c.l.b16 %v1346
    %v1399 = vunpack.c.h.b16 %v1346
    %v1400 = vunpack.c.l.b16 %v1347
    %v1401 = vunpack.c.h.b16 %v1347
    %v1402 = vunpack.c.l.b16 %v1348
    %v1403 = vunpack.c.h.b16 %v1348
    %v1404 = vunpack.c.l.b16 %v1349
    %v1405 = vunpack.c.h.b16 %v1349
    %v1406 = vunpack.c.l.b16 %v1350
    %v1407 = vunpack.c.h.b16 %v1350
    %v1408 = vunpack.c.l.b16 %v1351
    %v1409 = vunpack.c.h.b16 %v1351
    %v1410 = vunpack.c.l.b16 %v1352
    %v1411 = vunpack.c.h.b16 %v1352
    %v1412 = vunpack.c.l.b16 %v1353
    %v1413 = vunpack.c.h.b16 %v1353
    %v1414 = vpack.c.b16 %v1384, %v1382
    %v1415 = vpack.c.b16 %v1385, %v1383
    %v1416 = vpack.c.b16 %v1388, %v1386
    %v1417 = vpack.c.b16 %v1389, %v1387
    %v1418 = vpack.c.b16 %v1392, %v1390
    %v1419 = vpack.c.b16 %v1393, %v1391
    %v1420 = vpack.c.b16 %v1396, %v1394
    %v1421 = vpack.c.b16 %v1397, %v1395
    %v1422 = vpack.c.b16 %v1400, %v1398
    %v1423 = vpack.c.b16 %v1401, %v1399
    %v1424 = vpack.c.b16 %v1404, %v1402
    %v1425 = vpack.c.b16 %v1405, %v1403
    %v1426 = vpack.c.b16 %v1408, %v1406
    %v1427 = vpack.c.b16 %v1409, %v1407
    %v1428 = vpack.c.b16 %v1412, %v1410
    %v1429 = vpack.c.b16 %v1413, %v1411
    %1446 = vmatprep.subr.bf16.mxu0 %v1415
    %1447 = vmatpush1.bf16.msra.mxu0 %v1414
    %1448 = vmatprep.subr.bf16.mxu0 %v1417
    %1449 = vmatpush1.bf16.msra.mxu0 %v1416
    %1450 = vmatprep.subr.bf16.mxu0 %v1419
    %1451 = vmatpush1.bf16.msra.mxu0 %v1418
    %1452 = vmatprep.subr.bf16.mxu0 %v1421
    %1453 = vmatpush1.bf16.msra.mxu0 %v1420
    %1454 = vmatprep.subr.bf16.mxu0 %v1423
    %1455 = vmatpush1.bf16.msra.mxu0 %v1422
    %1456 = vmatprep.subr.bf16.mxu0 %v1425
    %1457 = vmatpush1.bf16.msra.mxu0 %v1424
    %1458 = vmatprep.subr.bf16.mxu0 %v1427
    %1459 = vmatpush1.bf16.msra.mxu0 %v1426
    %1460 = vmatprep.subr.bf16.mxu0 %v1429
    %1461 = vmatpush1.bf16.msra.mxu0 %v1428
    %1462 = vmatprep.subr.bf16.mxu0 0
    %1463 = vmatpush1.bf16.msra.mxu0 0
    %1464 = vmatprep.subr.bf16.mxu0 0
    %1465 = vmatpush1.bf16.msra.mxu0 0
    %1466 = vmatprep.subr.bf16.mxu0 0
    %1467 = vmatpush1.bf16.msra.mxu0 0
    %1468 = vmatprep.subr.bf16.mxu0 0
    %1469 = vmatpush1.bf16.msra.mxu0 0
    %1470 = vmatprep.subr.bf16.mxu0 0
    %1471 = vmatpush1.bf16.msra.mxu0 0
    %1472 = vmatprep.subr.bf16.mxu0 0
    %1473 = vmatpush1.bf16.msra.mxu0 0
    %1474 = vmatprep.subr.bf16.mxu0 0
    %1475 = vmatpush1.bf16.msra.mxu0 0
    %1476 = vmatprep.subr.bf16.mxu0 0
    %1477 = vmatpush1.bf16.msra.mxu0 0
    %1478 = vmatprep.mubr.bf16.mxu0 0
    %1479 = vmatmul.mubr.bf16.gmra.mrb[0].mxu0 %v1337
    %v1480 = vpop.f32.mrb[0].mxu0
    %v1481 = vadd.f32 %v1359, %v1480
    %v1482 = vpop.f32.mrb[0].mxu0
    %v1483 = vadd.f32 %v1363, %v1482
    %v1484 = vpop.f32.mrb[0].mxu0
    %v1485 = vadd.f32 %v1359, %v1484
    %v1486 = vpop.f32.mrb[0].mxu0
    %v1487 = vadd.f32 %v1363, %v1486
    %1488 = vdwg.mxu0
    %v1489 = vld [vmem:[#allocation8] sm:$0xff]
    %v1490 = vld [vmem:[#allocation8 + $0x8] sm:$0xff]
    %1493 = vrot.lane.b32.xlu0 %v1335, 96
    %v1494 = vpop.permute.xlu0 %1493
    %1495 = vrot.lane.b32.xlu0 %v1336, 96
    %v1496 = vpop.permute.xlu0 %1495
    %1499 = vrot.lane.b32.xlu0 %v1335, 64
    %v1500 = vpop.permute.xlu0 %1499
    %1501 = vrot.lane.b32.xlu0 %v1336, 64
    %v1502 = vpop.permute.xlu0 %1501
    %1505 = vrot.lane.b32.xlu0 %v1335, 32
    %v1506 = vpop.permute.xlu0 %1505
    %1507 = vrot.lane.b32.xlu0 %v1336, 32
    %v1508 = vpop.permute.xlu0 %1507
    %v1511 = vpack.c.bf16 %v1336, %v1335
    %v1512 = vpack.c.bf16 %v1496, %v1494
    %v1513 = vpack.c.bf16 %v1502, %v1500
    %v1514 = vpack.c.bf16 %v1508, %v1506
    %1517 = vrot.lane.b32.xlu0 %v1481, 96
    %v1518 = vpop.permute.xlu0 %1517
    %1519 = vrot.lane.b32.xlu0 %v1485, 96
    %v1520 = vpop.permute.xlu0 %1519
    %1523 = vrot.lane.b32.xlu0 %v1481, 64
    %v1524 = vpop.permute.xlu0 %1523
    %1525 = vrot.lane.b32.xlu0 %v1485, 64
    %v1526 = vpop.permute.xlu0 %1525
    %1529 = vrot.lane.b32.xlu0 %v1481, 32
    %v1530 = vpop.permute.xlu0 %1529
    %1531 = vrot.lane.b32.xlu0 %v1485, 32
    %v1532 = vpop.permute.xlu0 %1531
    %v1535 = vpack.c.bf16 %v1485, %v1481
    %v1536 = vpack.c.bf16 %v1520, %v1518
    %v1537 = vpack.c.bf16 %v1526, %v1524
    %v1538 = vpack.c.bf16 %v1532, %v1530
    %1541 = vrot.lane.b32.xlu0 %v1483, 96
    %v1542 = vpop.permute.xlu0 %1541
    %1543 = vrot.lane.b32.xlu0 %v1487, 96
    %v1544 = vpop.permute.xlu0 %1543
    %1547 = vrot.lane.b32.xlu0 %v1483, 64
    %v1548 = vpop.permute.xlu0 %1547
    %1549 = vrot.lane.b32.xlu0 %v1487, 64
    %v1550 = vpop.permute.xlu0 %1549
    %1553 = vrot.lane.b32.xlu0 %v1483, 32
    %v1554 = vpop.permute.xlu0 %1553
    %1555 = vrot.lane.b32.xlu0 %v1487, 32
    %v1556 = vpop.permute.xlu0 %1555
    %v1559 = vpack.c.bf16 %v1487, %v1483
    %v1560 = vpack.c.bf16 %v1544, %v1542
    %v1561 = vpack.c.bf16 %v1550, %v1548
    %v1562 = vpack.c.bf16 %v1556, %v1554
    %v1564 = vsel %vm570, %v1511, 0
    %v1567 = vsel %vm570, %v1535, 0
    %1569 = vmatprep.subr.bf16.mxu0 0
    %1570 = vmatpush1.bf16.xpose.msra.mxu0 %v1567
    %1571 = vmatprep.subr.bf16.mxu0 0
    %1572 = vmatpush1.bf16.xpose.msra.mxu0 0
    %1573 = vmatprep.subr.bf16.mxu0 0
    %1574 = vmatpush1.bf16.xpose.msra.mxu0 0
    %1575 = vmatprep.subr.bf16.mxu0 0
    %1576 = vmatpush1.bf16.xpose.msra.mxu0 0
    %1577 = vmatprep.subr.bf16.mxu0 0
    %1578 = vmatpush1.bf16.xpose.msra.mxu0 0
    %1579 = vmatprep.subr.bf16.mxu0 0
    %1580 = vmatpush1.bf16.xpose.msra.mxu0 0
    %1581 = vmatprep.subr.bf16.mxu0 0
    %1582 = vmatpush1.bf16.xpose.msra.mxu0 0
    %1583 = vmatprep.subr.bf16.mxu0 0
    %1584 = vmatpush1.bf16.xpose.msra.mxu0 0
    %1585 = vmatprep.subr.bf16.mxu0 0
    %1586 = vmatpush1.bf16.xpose.msra.mxu0 0
    %1587 = vmatprep.subr.bf16.mxu0 0
    %1588 = vmatpush1.bf16.xpose.msra.mxu0 0
    %1589 = vmatprep.subr.bf16.mxu0 0
    %1590 = vmatpush1.bf16.xpose.msra.mxu0 0
    %1591 = vmatprep.subr.bf16.mxu0 0
    %1592 = vmatpush1.bf16.xpose.msra.mxu0 0
    %1593 = vmatprep.subr.bf16.mxu0 0
    %1594 = vmatpush1.bf16.xpose.msra.mxu0 0
    %1595 = vmatprep.subr.bf16.mxu0 0
    %1596 = vmatpush1.bf16.xpose.msra.mxu0 0
    %1597 = vmatprep.subr.bf16.mxu0 0
    %1598 = vmatpush1.bf16.xpose.msra.mxu0 0
    %1599 = vmatprep.subr.bf16.mxu0 0
    %1600 = vmatpush1.bf16.xpose.msra.mxu0 0
    %1601 = vmatprep.mubr.bf16.mxu0 0
    %1602 = vmatmul.mubr.bf16.gmra.mrb[0].mxu0 %v1564
    %v1603 = vpop.f32.mrb[0].mxu0
    %v1604 = vadd.f32 %v1489, %v1603
    %v1605 = vpop.f32.mrb[0].mxu0
    %v1606 = vpop.f32.mrb[0].mxu0
    %v1607 = vadd.f32 %v1490, %v1606
    %v1608 = vpop.f32.mrb[0].mxu0
    %1609 = vdwg.mxu0
    %v1611 = vsel %vm570, %v1512, 0
    %v1614 = vsel %vm570, %v1536, 0
    %1616 = vmatprep.subr.bf16.mxu0 0
    %1617 = vmatpush1.bf16.xpose.msra.mxu0 %v1614
    %1618 = vmatprep.subr.bf16.mxu0 0
    %1619 = vmatpush1.bf16.xpose.msra.mxu0 0
    %1620 = vmatprep.subr.bf16.mxu0 0
    %1621 = vmatpush1.bf16.xpose.msra.mxu0 0
    %1622 = vmatprep.subr.bf16.mxu0 0
    %1623 = vmatpush1.bf16.xpose.msra.mxu0 0
    %1624 = vmatprep.subr.bf16.mxu0 0
    %1625 = vmatpush1.bf16.xpose.msra.mxu0 0
    %1626 = vmatprep.subr.bf16.mxu0 0
    %1627 = vmatpush1.bf16.xpose.msra.mxu0 0
    %1628 = vmatprep.subr.bf16.mxu0 0
    %1629 = vmatpush1.bf16.xpose.msra.mxu0 0
    %1630 = vmatprep.subr.bf16.mxu0 0
    %1631 = vmatpush1.bf16.xpose.msra.mxu0 0
    %1632 = vmatprep.subr.bf16.mxu0 0
    %1633 = vmatpush1.bf16.xpose.msra.mxu0 0
    %1634 = vmatprep.subr.bf16.mxu0 0
    %1635 = vmatpush1.bf16.xpose.msra.mxu0 0
    %1636 = vmatprep.subr.bf16.mxu0 0
    %1637 = vmatpush1.bf16.xpose.msra.mxu0 0
    %1638 = vmatprep.subr.bf16.mxu0 0
    %1639 = vmatpush1.bf16.xpose.msra.mxu0 0
    %1640 = vmatprep.subr.bf16.mxu0 0
    %1641 = vmatpush1.bf16.xpose.msra.mxu0 0
    %1642 = vmatprep.subr.bf16.mxu0 0
    %1643 = vmatpush1.bf16.xpose.msra.mxu0 0
    %1644 = vmatprep.subr.bf16.mxu0 0
    %1645 = vmatpush1.bf16.xpose.msra.mxu0 0
    %1646 = vmatprep.subr.bf16.mxu0 0
    %1647 = vmatpush1.bf16.xpose.msra.mxu0 0
    %1648 = vmatprep.mubr.bf16.mxu0 0
    %1649 = vmatmul.mubr.bf16.gmra.mrb[0].mxu0 %v1611
    %v1650 = vpop.f32.mrb[0].mxu0
    %v1651 = vadd.f32 %v1489, %v1650
    %v1652 = vpop.f32.mrb[0].mxu0
    %v1653 = vpop.f32.mrb[0].mxu0
    %v1654 = vadd.f32 %v1490, %v1653
    %v1655 = vpop.f32.mrb[0].mxu0
    %1656 = vdwg.mxu0
    %v1658 = vsel %vm570, %v1513, 0
    %v1661 = vsel %vm570, %v1537, 0
    %1663 = vmatprep.subr.bf16.mxu0 0
    %1664 = vmatpush1.bf16.xpose.msra.mxu0 %v1661
    %1665 = vmatprep.subr.bf16.mxu0 0
    %1666 = vmatpush1.bf16.xpose.msra.mxu0 0
    %1667 = vmatprep.subr.bf16.mxu0 0
    %1668 = vmatpush1.bf16.xpose.msra.mxu0 0
    %1669 = vmatprep.subr.bf16.mxu0 0
    %1670 = vmatpush1.bf16.xpose.msra.mxu0 0
    %1671 = vmatprep.subr.bf16.mxu0 0
    %1672 = vmatpush1.bf16.xpose.msra.mxu0 0
    %1673 = vmatprep.subr.bf16.mxu0 0
    %1674 = vmatpush1.bf16.xpose.msra.mxu0 0
    %1675 = vmatprep.subr.bf16.mxu0 0
    %1676 = vmatpush1.bf16.xpose.msra.mxu0 0
    %1677 = vmatprep.subr.bf16.mxu0 0
    %1678 = vmatpush1.bf16.xpose.msra.mxu0 0
    %1679 = vmatprep.subr.bf16.mxu0 0
    %1680 = vmatpush1.bf16.xpose.msra.mxu0 0
    %1681 = vmatprep.subr.bf16.mxu0 0
    %1682 = vmatpush1.bf16.xpose.msra.mxu0 0
    %1683 = vmatprep.subr.bf16.mxu0 0
    %1684 = vmatpush1.bf16.xpose.msra.mxu0 0
    %1685 = vmatprep.subr.bf16.mxu0 0
    %1686 = vmatpush1.bf16.xpose.msra.mxu0 0
    %1687 = vmatprep.subr.bf16.mxu0 0
    %1688 = vmatpush1.bf16.xpose.msra.mxu0 0
    %1689 = vmatprep.subr.bf16.mxu0 0
    %1690 = vmatpush1.bf16.xpose.msra.mxu0 0
    %1691 = vmatprep.subr.bf16.mxu0 0
    %1692 = vmatpush1.bf16.xpose.msra.mxu0 0
    %1693 = vmatprep.subr.bf16.mxu0 0
    %1694 = vmatpush1.bf16.xpose.msra.mxu0 0
    %1695 = vmatprep.mubr.bf16.mxu0 0
    %1696 = vmatmul.mubr.bf16.gmra.mrb[0].mxu0 %v1658
    %v1697 = vpop.f32.mrb[0].mxu0
    %v1698 = vadd.f32 %v1489, %v1697
    %v1699 = vpop.f32.mrb[0].mxu0
    %v1700 = vpop.f32.mrb[0].mxu0
    %v1701 = vadd.f32 %v1490, %v1700
    %v1702 = vpop.f32.mrb[0].mxu0
    %1703 = vdwg.mxu0
    %v1705 = vsel %vm570, %v1514, 0
    %v1708 = vsel %vm570, %v1538, 0
    %1710 = vmatprep.subr.bf16.mxu0 0
    %1711 = vmatpush1.bf16.xpose.msra.mxu0 %v1708
    %1712 = vmatprep.subr.bf16.mxu0 0
    %1713 = vmatpush1.bf16.xpose.msra.mxu0 0
    %1714 = vmatprep.subr.bf16.mxu0 0
    %1715 = vmatpush1.bf16.xpose.msra.mxu0 0
    %1716 = vmatprep.subr.bf16.mxu0 0
    %1717 = vmatpush1.bf16.xpose.msra.mxu0 0
    %1718 = vmatprep.subr.bf16.mxu0 0
    %1719 = vmatpush1.bf16.xpose.msra.mxu0 0
    %1720 = vmatprep.subr.bf16.mxu0 0
    %1721 = vmatpush1.bf16.xpose.msra.mxu0 0
    %1722 = vmatprep.subr.bf16.mxu0 0
    %1723 = vmatpush1.bf16.xpose.msra.mxu0 0
    %1724 = vmatprep.subr.bf16.mxu0 0
    %1725 = vmatpush1.bf16.xpose.msra.mxu0 0
    %1726 = vmatprep.subr.bf16.mxu0 0
    %1727 = vmatpush1.bf16.xpose.msra.mxu0 0
    %1728 = vmatprep.subr.bf16.mxu0 0
    %1729 = vmatpush1.bf16.xpose.msra.mxu0 0
    %1730 = vmatprep.subr.bf16.mxu0 0
    %1731 = vmatpush1.bf16.xpose.msra.mxu0 0
    %1732 = vmatprep.subr.bf16.mxu0 0
    %1733 = vmatpush1.bf16.xpose.msra.mxu0 0
    %1734 = vmatprep.subr.bf16.mxu0 0
    %1735 = vmatpush1.bf16.xpose.msra.mxu0 0
    %1736 = vmatprep.subr.bf16.mxu0 0
    %1737 = vmatpush1.bf16.xpose.msra.mxu0 0
    %1738 = vmatprep.subr.bf16.mxu0 0
    %1739 = vmatpush1.bf16.xpose.msra.mxu0 0
    %1740 = vmatprep.subr.bf16.mxu0 0
    %1741 = vmatpush1.bf16.xpose.msra.mxu0 0
    %1742 = vmatprep.mubr.bf16.mxu0 0
    %1743 = vmatmul.mubr.bf16.gmra.mrb[0].mxu0 %v1705
    %v1744 = vpop.f32.mrb[0].mxu0
    %v1745 = vadd.f32 %v1489, %v1744
    %v1746 = vpop.f32.mrb[0].mxu0
    %v1747 = vpop.f32.mrb[0].mxu0
    %v1748 = vadd.f32 %v1490, %v1747
    %v1749 = vpop.f32.mrb[0].mxu0
    %1750 = vdwg.mxu0
    %v1751 = vsel %vm759, %v1604, -inf
    %1752 = vmax.xlane.f32.xlu0 %v1751
    %v1753 = vpop.xlane.xlu0 %1752
    %v1754 = vsel %vm759, %v1607, -inf
    %1755 = vmax.xlane.f32.xlu0 %v1754
    %v1756 = vpop.xlane.xlu0 %1755
    %v1757 = vsel %vm759, %v1651, -inf
    %1758 = vmax.xlane.f32.xlu0 %v1757
    %v1759 = vpop.xlane.xlu0 %1758
    %v1760 = vsel %vm759, %v1654, -inf
    %1761 = vmax.xlane.f32.xlu0 %v1760
    %v1762 = vpop.xlane.xlu0 %1761
    %v1763 = vsel %vm759, %v1698, -inf
    %1764 = vmax.xlane.f32.xlu0 %v1763
    %v1765 = vpop.xlane.xlu0 %1764
    %v1766 = vsel %vm759, %v1701, -inf
    %1767 = vmax.xlane.f32.xlu0 %v1766
    %v1768 = vpop.xlane.xlu0 %1767
    %v1769 = vsel %vm759, %v1745, -inf
    %1770 = vmax.xlane.f32.xlu0 %v1769
    %v1771 = vpop.xlane.xlu0 %1770
    %v1772 = vsel %vm759, %v1748, -inf
    %1773 = vmax.xlane.f32.xlu0 %v1772
    %v1774 = vpop.xlane.xlu0 %1773
    %v1775 = vsub.f32 %v1604, %v1753
    %v1776 = vsub.f32 %v1607, %v1756
    %v1777 = vsub.f32 %v1651, %v1759
    %v1778 = vsub.f32 %v1654, %v1762
    %v1779 = vsub.f32 %v1698, %v1765
    %v1780 = vsub.f32 %v1701, %v1768
    %v1781 = vsub.f32 %v1745, %v1771
    %v1782 = vsub.f32 %v1748, %v1774
    %v1783 = vmul.f32 %v1775, 1.442695
    %v1784 = vpow.pop %v1783
    %v1785 = vmul.f32 %v1776, 1.442695
    %v1786 = vpow.pop %v1785
    %v1787 = vmul.f32 %v1777, 1.442695
    %v1788 = vpow.pop %v1787
    %v1789 = vmul.f32 %v1778, 1.442695
    %v1790 = vpow.pop %v1789
    %v1791 = vmul.f32 %v1779, 1.442695
    %v1792 = vpow.pop %v1791
    %v1793 = vmul.f32 %v1780, 1.442695
    %v1794 = vpow.pop %v1793
    %v1795 = vmul.f32 %v1781, 1.442695
    %v1796 = vpow.pop %v1795
    %v1797 = vmul.f32 %v1782, 1.442695
    %v1798 = vpow.pop %v1797
    %v1799 = vsel %vm759, %v1784, 0.0
    %1800 = vadd.xlane.f32.xlu0 %v1799
    %v1801 = vpop.xlane.xlu0 %1800
    %v1802 = vsel %vm759, %v1786, 0.0
    %1803 = vadd.xlane.f32.xlu0 %v1802
    %v1804 = vpop.xlane.xlu0 %1803
    %v1805 = vsel %vm759, %v1788, 0.0
    %1806 = vadd.xlane.f32.xlu0 %v1805
    %v1807 = vpop.xlane.xlu0 %1806
    %v1808 = vsel %vm759, %v1790, 0.0
    %1809 = vadd.xlane.f32.xlu0 %v1808
    %v1810 = vpop.xlane.xlu0 %1809
    %v1811 = vsel %vm759, %v1792, 0.0
    %1812 = vadd.xlane.f32.xlu0 %v1811
    %v1813 = vpop.xlane.xlu0 %1812
    %v1814 = vsel %vm759, %v1794, 0.0
    %1815 = vadd.xlane.f32.xlu0 %v1814
    %v1816 = vpop.xlane.xlu0 %1815
    %v1817 = vsel %vm759, %v1796, 0.0
    %1818 = vadd.xlane.f32.xlu0 %v1817
    %v1819 = vpop.xlane.xlu0 %1818
    %v1820 = vsel %vm759, %v1798, 0.0
    %1821 = vadd.xlane.f32.xlu0 %v1820
    %v1822 = vpop.xlane.xlu0 %1821
    %v1823 = vpack.c.bf16 %v1786, %v1784
    %v1824 = vpack.c.bf16 %v1790, %v1788
    %v1825 = vpack.c.bf16 %v1794, %v1792
    %v1826 = vpack.c.bf16 %v1798, %v1796
    %v1828 = vsel %vm759, %v1823, 0
    %1830 = vmatprep.subr.bf16.mxu0 0
    %1831 = vmatpush1.bf16.msra.mxu0 %v1559
    %1832 = vmatprep.subr.bf16.mxu0 0
    %1833 = vmatpush1.bf16.msra.mxu0 0
    %1834 = vmatprep.subr.bf16.mxu0 0
    %1835 = vmatpush1.bf16.msra.mxu0 0
    %1836 = vmatprep.subr.bf16.mxu0 0
    %1837 = vmatpush1.bf16.msra.mxu0 0
    %1838 = vmatprep.subr.bf16.mxu0 0
    %1839 = vmatpush1.bf16.msra.mxu0 0
    %1840 = vmatprep.subr.bf16.mxu0 0
    %1841 = vmatpush1.bf16.msra.mxu0 0
    %1842 = vmatprep.subr.bf16.mxu0 0
    %1843 = vmatpush1.bf16.msra.mxu0 0
    %1844 = vmatprep.subr.bf16.mxu0 0
    %1845 = vmatpush1.bf16.msra.mxu0 0
    %1846 = vmatprep.subr.bf16.mxu0 0
    %1847 = vmatpush1.bf16.msra.mxu0 0
    %1848 = vmatprep.subr.bf16.mxu0 0
    %1849 = vmatpush1.bf16.msra.mxu0 0
    %1850 = vmatprep.subr.bf16.mxu0 0
    %1851 = vmatpush1.bf16.msra.mxu0 0
    %1852 = vmatprep.subr.bf16.mxu0 0
    %1853 = vmatpush1.bf16.msra.mxu0 0
    %1854 = vmatprep.subr.bf16.mxu0 0
    %1855 = vmatpush1.bf16.msra.mxu0 0
    %1856 = vmatprep.subr.bf16.mxu0 0
    %1857 = vmatpush1.bf16.msra.mxu0 0
    %1858 = vmatprep.subr.bf16.mxu0 0
    %1859 = vmatpush1.bf16.msra.mxu0 0
    %1860 = vmatprep.subr.bf16.mxu0 0
    %1861 = vmatpush1.bf16.msra.mxu0 0
    %1862 = vmatprep.mubr.bf16.mxu0 0
    %1863 = vmatmul.mubr.bf16.gmra.mrb[0].mxu0 %v1828
    %v1864 = vpop.f32.mrb[0].mxu0
    %v1865 = vadd.f32 0.0, %v1864
    %v1866 = vpop.f32.mrb[0].mxu0
    %v1867 = vpop.f32.mrb[0].mxu0
    %v1868 = vadd.f32 0.0, %v1867
    %v1869 = vpop.f32.mrb[0].mxu0
    %1870 = vdwg.mxu0
    %v1872 = vsel %vm759, %v1824, 0
    %1874 = vmatprep.subr.bf16.mxu0 0
    %1875 = vmatpush1.bf16.msra.mxu0 %v1560
    %1876 = vmatprep.subr.bf16.mxu0 0
    %1877 = vmatpush1.bf16.msra.mxu0 0
    %1878 = vmatprep.subr.bf16.mxu0 0
    %1879 = vmatpush1.bf16.msra.mxu0 0
    %1880 = vmatprep.subr.bf16.mxu0 0
    %1881 = vmatpush1.bf16.msra.mxu0 0
    %1882 = vmatprep.subr.bf16.mxu0 0
    %1883 = vmatpush1.bf16.msra.mxu0 0
    %1884 = vmatprep.subr.bf16.mxu0 0
    %1885 = vmatpush1.bf16.msra.mxu0 0
    %1886 = vmatprep.subr.bf16.mxu0 0
    %1887 = vmatpush1.bf16.msra.mxu0 0
    %1888 = vmatprep.subr.bf16.mxu0 0
    %1889 = vmatpush1.bf16.msra.mxu0 0
    %1890 = vmatprep.subr.bf16.mxu0 0
    %1891 = vmatpush1.bf16.msra.mxu0 0
    %1892 = vmatprep.subr.bf16.mxu0 0
    %1893 = vmatpush1.bf16.msra.mxu0 0
    %1894 = vmatprep.subr.bf16.mxu0 0
    %1895 = vmatpush1.bf16.msra.mxu0 0
    %1896 = vmatprep.subr.bf16.mxu0 0
    %1897 = vmatpush1.bf16.msra.mxu0 0
    %1898 = vmatprep.subr.bf16.mxu0 0
    %1899 = vmatpush1.bf16.msra.mxu0 0
    %1900 = vmatprep.subr.bf16.mxu0 0
    %1901 = vmatpush1.bf16.msra.mxu0 0
    %1902 = vmatprep.subr.bf16.mxu0 0
    %1903 = vmatpush1.bf16.msra.mxu0 0
    %1904 = vmatprep.subr.bf16.mxu0 0
    %1905 = vmatpush1.bf16.msra.mxu0 0
    %1906 = vmatprep.mubr.bf16.mxu0 0
    %1907 = vmatmul.mubr.bf16.gmra.mrb[0].mxu0 %v1872
    %v1908 = vpop.f32.mrb[0].mxu0
    %v1909 = vadd.f32 0.0, %v1908
    %v1910 = vpop.f32.mrb[0].mxu0
    %v1911 = vpop.f32.mrb[0].mxu0
    %v1912 = vadd.f32 0.0, %v1911
    %v1913 = vpop.f32.mrb[0].mxu0
    %1914 = vdwg.mxu0
    %v1916 = vsel %vm759, %v1825, 0
    %1918 = vmatprep.subr.bf16.mxu0 0
    %1919 = vmatpush1.bf16.msra.mxu0 %v1561
    %1920 = vmatprep.subr.bf16.mxu0 0
    %1921 = vmatpush1.bf16.msra.mxu0 0
    %1922 = vmatprep.subr.bf16.mxu0 0
    %1923 = vmatpush1.bf16.msra.mxu0 0
    %1924 = vmatprep.subr.bf16.mxu0 0
    %1925 = vmatpush1.bf16.msra.mxu0 0
    %1926 = vmatprep.subr.bf16.mxu0 0
    %1927 = vmatpush1.bf16.msra.mxu0 0
    %1928 = vmatprep.subr.bf16.mxu0 0
    %1929 = vmatpush1.bf16.msra.mxu0 0
    %1930 = vmatprep.subr.bf16.mxu0 0
    %1931 = vmatpush1.bf16.msra.mxu0 0
    %1932 = vmatprep.subr.bf16.mxu0 0
    %1933 = vmatpush1.bf16.msra.mxu0 0
    %1934 = vmatprep.subr.bf16.mxu0 0
    %1935 = vmatpush1.bf16.msra.mxu0 0
    %1936 = vmatprep.subr.bf16.mxu0 0
    %1937 = vmatpush1.bf16.msra.mxu0 0
    %1938 = vmatprep.subr.bf16.mxu0 0
    %1939 = vmatpush1.bf16.msra.mxu0 0
    %1940 = vmatprep.subr.bf16.mxu0 0
    %1941 = vmatpush1.bf16.msra.mxu0 0
    %1942 = vmatprep.subr.bf16.mxu0 0
    %1943 = vmatpush1.bf16.msra.mxu0 0
    %1944 = vmatprep.subr.bf16.mxu0 0
    %1945 = vmatpush1.bf16.msra.mxu0 0
    %1946 = vmatprep.subr.bf16.mxu0 0
    %1947 = vmatpush1.bf16.msra.mxu0 0
    %1948 = vmatprep.subr.bf16.mxu0 0
    %1949 = vmatpush1.bf16.msra.mxu0 0
    %1950 = vmatprep.mubr.bf16.mxu0 0
    %1951 = vmatmul.mubr.bf16.gmra.mrb[0].mxu0 %v1916
    %v1952 = vpop.f32.mrb[0].mxu0
    %v1953 = vadd.f32 0.0, %v1952
    %v1954 = vpop.f32.mrb[0].mxu0
    %v1955 = vpop.f32.mrb[0].mxu0
    %v1956 = vadd.f32 0.0, %v1955
    %v1957 = vpop.f32.mrb[0].mxu0
    %1958 = vdwg.mxu0
    %v1960 = vsel %vm759, %v1826, 0
    %1962 = vmatprep.subr.bf16.mxu0 0
    %1963 = vmatpush1.bf16.msra.mxu0 %v1562
    %1964 = vmatprep.subr.bf16.mxu0 0
    %1965 = vmatpush1.bf16.msra.mxu0 0
    %1966 = vmatprep.subr.bf16.mxu0 0
    %1967 = vmatpush1.bf16.msra.mxu0 0
    %1968 = vmatprep.subr.bf16.mxu0 0
    %1969 = vmatpush1.bf16.msra.mxu0 0
    %1970 = vmatprep.subr.bf16.mxu0 0
    %1971 = vmatpush1.bf16.msra.mxu0 0
    %1972 = vmatprep.subr.bf16.mxu0 0
    %1973 = vmatpush1.bf16.msra.mxu0 0
    %1974 = vmatprep.subr.bf16.mxu0 0
    %1975 = vmatpush1.bf16.msra.mxu0 0
    %1976 = vmatprep.subr.bf16.mxu0 0
    %1977 = vmatpush1.bf16.msra.mxu0 0
    %1978 = vmatprep.subr.bf16.mxu0 0
    %1979 = vmatpush1.bf16.msra.mxu0 0
    %1980 = vmatprep.subr.bf16.mxu0 0
    %1981 = vmatpush1.bf16.msra.mxu0 0
    %1982 = vmatprep.subr.bf16.mxu0 0
    %1983 = vmatpush1.bf16.msra.mxu0 0
    %1984 = vmatprep.subr.bf16.mxu0 0
    %1985 = vmatpush1.bf16.msra.mxu0 0
    %1986 = vmatprep.subr.bf16.mxu0 0
    %1987 = vmatpush1.bf16.msra.mxu0 0
    %1988 = vmatprep.subr.bf16.mxu0 0
    %1989 = vmatpush1.bf16.msra.mxu0 0
    %1990 = vmatprep.subr.bf16.mxu0 0
    %1991 = vmatpush1.bf16.msra.mxu0 0
    %1992 = vmatprep.subr.bf16.mxu0 0
    %1993 = vmatpush1.bf16.msra.mxu0 0
    %1994 = vmatprep.mubr.bf16.mxu0 0
    %1995 = vmatmul.mubr.bf16.gmra.mrb[0].mxu0 %v1960
    %v1996 = vpop.f32.mrb[0].mxu0
    %v1997 = vadd.f32 0.0, %v1996
    %v1998 = vpop.f32.mrb[0].mxu0
    %v1999 = vpop.f32.mrb[0].mxu0
    %v2000 = vadd.f32 0.0, %v1999
    %v2001 = vpop.f32.mrb[0].mxu0
    %2002 = vdwg.mxu0
    %v2003 = vrcp.pop %v1801
    %v2004 = vrcp.pop %v1804
    %v2005 = vrcp.pop %v1807
    %v2006 = vrcp.pop %v1810
    %v2007 = vrcp.pop %v1813
    %v2008 = vrcp.pop %v1816
    %v2009 = vrcp.pop %v1819
    %v2010 = vrcp.pop %v1822
    %v2011 = vmul.f32 %v1865, %v2003
    %v2012 = vmul.f32 %v1868, %v2004
    %v2013 = vmul.f32 %v1909, %v2005
    %v2014 = vmul.f32 %v1912, %v2006
    %v2015 = vmul.f32 %v1953, %v2007
    %v2016 = vmul.f32 %v1956, %v2008
    %v2017 = vmul.f32 %v1997, %v2009
    %v2018 = vmul.f32 %v2000, %v2010
    %2021 = vrot.lane.b32.xlu0 %v2013, 32
    %v2022 = vpop.permute.xlu0 %2021
    %2023 = vrot.lane.b32.xlu0 %v2014, 32
    %v2024 = vpop.permute.xlu0 %2023
    %2029 = vrot.lane.b32.xlu0 %v2015, 64
    %v2030 = vpop.permute.xlu0 %2029
    %2031 = vrot.lane.b32.xlu0 %v2016, 64
    %v2032 = vpop.permute.xlu0 %2031
    %2037 = vrot.lane.b32.xlu0 %v2017, 96
    %v2038 = vpop.permute.xlu0 %2037
    %2039 = vrot.lane.b32.xlu0 %v2018, 96
    %v2040 = vpop.permute.xlu0 %2039
    %v2043 = vsel %vm570, %v2011, %v2022
    %v2044 = vsel %vm570, %v2012, %v2024
    %v2045 = vsel %vm1054, %v2043, %v2030
    %v2046 = vsel %vm1054, %v2044, %v2032
    %v2047 = vsel %vm1057, %v2045, %v2038
    %v2048 = vsel %vm1057, %v2046, %v2040
    %v2049 = vpack.c.bf16 %v2048, %v2047
    %v2050 = vld [vmem:[#allocation16] sm:$0xf]
    %v2051 = vld [vmem:[#allocation16 + $0x4] sm:$0xf]
    %v2052 = vld [vmem:[#allocation16 + $0x8] sm:$0xf]
    %v2053 = vld [vmem:[#allocation16 + $0xc] sm:$0xf]
    %v2054 = vld [vmem:[#allocation16 + $0x10] sm:$0xf]
    %v2055 = vld [vmem:[#allocation16 + $0x14] sm:$0xf]
    %v2056 = vld [vmem:[#allocation16 + $0x18] sm:$0xf]
    %v2057 = vld [vmem:[#allocation16 + $0x1c] sm:$0xf]
    %v2058 = vld [vmem:[#allocation16 + $0x20] sm:$0xf]
    %v2059 = vld [vmem:[#allocation16 + $0x24] sm:$0xf]
    %v2060 = vld [vmem:[#allocation16 + $0x28] sm:$0xf]
    %v2061 = vld [vmem:[#allocation16 + $0x2c] sm:$0xf]
    %v2062 = vld [vmem:[#allocation16 + $0x30] sm:$0xf]
    %v2063 = vld [vmem:[#allocation16 + $0x34] sm:$0xf]
    %v2064 = vld [vmem:[#allocation16 + $0x38] sm:$0xf]
    %v2065 = vld [vmem:[#allocation16 + $0x3c] sm:$0xf]
    %v2066 = vld [vmem:[%s13] sm:$0x1]
    %v2068 = vlaneseq
    %v2069 = vshrl.u32 %v2068, 7
    %v2070 = vsub.s32 0, %v2069
    %v2071 = vrot.slane %v2066, %v2070
    %v2089 = vunpack.c.l.b16 %v2050
    %v2090 = vunpack.c.l.b16 %v2051
    %v2091 = vunpack.c.l.b16 %v2052
    %v2092 = vunpack.c.l.b16 %v2053
    %v2093 = vunpack.c.l.b16 %v2054
    %v2094 = vunpack.c.l.b16 %v2055
    %v2095 = vunpack.c.l.b16 %v2056
    %v2096 = vunpack.c.l.b16 %v2057
    %v2097 = vunpack.c.l.b16 %v2058
    %v2098 = vunpack.c.l.b16 %v2059
    %v2099 = vunpack.c.l.b16 %v2060
    %v2100 = vunpack.c.l.b16 %v2061
    %v2101 = vunpack.c.l.b16 %v2062
    %v2102 = vunpack.c.l.b16 %v2063
    %v2103 = vunpack.c.l.b16 %v2064
    %v2104 = vunpack.c.l.b16 %v2065
    %v2105 = vpack.c.b16 %v2090, %v2089
    %v2106 = vpack.c.b16 %v2092, %v2091
    %v2107 = vpack.c.b16 %v2094, %v2093
    %v2108 = vpack.c.b16 %v2096, %v2095
    %v2109 = vpack.c.b16 %v2098, %v2097
    %v2110 = vpack.c.b16 %v2100, %v2099
    %v2111 = vpack.c.b16 %v2102, %v2101
    %v2112 = vpack.c.b16 %v2104, %v2103
    %2121 = vmatprep.subr.bf16.mxu0 0
    %2122 = vmatpush1.bf16.msra.mxu0 %v2105
    %2123 = vmatprep.subr.bf16.mxu0 0
    %2124 = vmatpush1.bf16.msra.mxu0 %v2106
    %2125 = vmatprep.subr.bf16.mxu0 0
    %2126 = vmatpush1.bf16.msra.mxu0 %v2107
    %2127 = vmatprep.subr.bf16.mxu0 0
    %2128 = vmatpush1.bf16.msra.mxu0 %v2108
    %2129 = vmatprep.subr.bf16.mxu0 0
    %2130 = vmatpush1.bf16.msra.mxu0 %v2109
    %2131 = vmatprep.subr.bf16.mxu0 0
    %2132 = vmatpush1.bf16.msra.mxu0 %v2110
    %2133 = vmatprep.subr.bf16.mxu0 0
    %2134 = vmatpush1.bf16.msra.mxu0 %v2111
    %2135 = vmatprep.subr.bf16.mxu0 0
    %2136 = vmatpush1.bf16.msra.mxu0 %v2112
    %2137 = vmatprep.subr.bf16.mxu0 0
    %2138 = vmatpush1.bf16.msra.mxu0 0
    %2139 = vmatprep.subr.bf16.mxu0 0
    %2140 = vmatpush1.bf16.msra.mxu0 0
    %2141 = vmatprep.subr.bf16.mxu0 0
    %2142 = vmatpush1.bf16.msra.mxu0 0
    %2143 = vmatprep.subr.bf16.mxu0 0
    %2144 = vmatpush1.bf16.msra.mxu0 0
    %2145 = vmatprep.subr.bf16.mxu0 0
    %2146 = vmatpush1.bf16.msra.mxu0 0
    %2147 = vmatprep.subr.bf16.mxu0 0
    %2148 = vmatpush1.bf16.msra.mxu0 0
    %2149 = vmatprep.subr.bf16.mxu0 0
    %2150 = vmatpush1.bf16.msra.mxu0 0
    %2151 = vmatprep.subr.bf16.mxu0 0
    %2152 = vmatpush1.bf16.msra.mxu0 0
    %2153 = vmatprep.mubr.bf16.mxu0 0
    %2154 = vmatmul.mubr.bf16.gmra.mrb[0].mxu0 %v2049
    %v2155 = vpop.f32.mrb[0].mxu0
    %v2156 = vadd.f32 %v2071, %v2155
    %v2157 = vpop.f32.mrb[0].mxu0
    %v2158 = vpop.f32.mrb[0].mxu0
    %v2159 = vadd.f32 %v2071, %v2158
    %v2160 = vpop.f32.mrb[0].mxu0
    %2161 = vdwg.mxu0
    %v2162 = vmul.f32 %v1220, 2.0
    %v2163 = vmul.f32 %v1221, 2.0
    %v2164 = vadd.f32 %v2162, %v2156
    %v2165 = vadd.f32 %v2163, %v2159
    %2166 = vadd.xlane.f32.xlu0 %v2164
    %v2167 = vpop.xlane.xlu0 %2166
    %2168 = vadd.xlane.f32.xlu0 %v2165
    %v2169 = vpop.xlane.xlu0 %2168
    %v2170 = vmul.f32 %v2167, %v1181
    %v2171 = vmul.f32 %v2169, %v1181
    %v2172 = vmul.f32 %v2164, %v2164
    %v2173 = vmul.f32 %v2165, %v2165
    %2174 = vadd.xlane.f32.xlu0 %v2172
    %v2175 = vpop.xlane.xlu0 %2174
    %2176 = vadd.xlane.f32.xlu0 %v2173
    %v2177 = vpop.xlane.xlu0 %2176
    %v2178 = vmul.f32 %v2175, %v1181
    %v2179 = vmul.f32 %v2177, %v1181
    %v2180 = vmul.f32 %v2170, %v2170
    %v2181 = vmul.f32 %v2171, %v2171
    %v2182 = vsub.f32 %v2178, %v2180
    %v2183 = vsub.f32 %v2179, %v2181
    %v2184 = vsub.f32 %v2164, %v2170
    %v2185 = vsub.f32 %v2165, %v2171
    %v2186 = vadd.f32 %v2182, 1e-05
    %v2187 = vadd.f32 %v2183, 1e-05
    %v2188 = vrsqrt.pop %v2186
    %v2189 = vrsqrt.pop %v2187
    %v2190 = vmul.f32 %v2184, %v2188
    %v2191 = vmul.f32 %v2185, %v2189
    %v2192 = vld [vmem:[%s20] sm:$0x1]
    %v2194 = vlaneseq
    %v2195 = vshrl.u32 %v2194, 7
    %v2196 = vsub.s32 0, %v2195
    %v2197 = vrot.slane %v2192, %v2196
    %v2199 = vmul.f32 %v2197, %v2190
    %v2200 = vmul.f32 %v2197, %v2191
    %v2201 = vld [vmem:[%s21] sm:$0x1]
    %v2203 = vlaneseq
    %v2204 = vshrl.u32 %v2203, 7
    %v2205 = vsub.s32 0, %v2204
    %v2206 = vrot.slane %v2201, %v2205
    %v2208 = vadd.f32 %v2199, %v2206
    %v2209 = vadd.f32 %v2200, %v2206
    %v2210 = vpack.c.bf16 %v2209, %v2208
    %v2211 = vld [vmem:[#allocation17] sm:$0xff]
    %v2212 = vld [vmem:[#allocation17 + $0x8] sm:$0xff]
    %v2213 = vld [vmem:[#allocation17 + $0x10] sm:$0xff]
    %v2214 = vld [vmem:[#allocation17 + $0x18] sm:$0xff]
    %v2215 = vld [vmem:[#allocation17 + $0x20] sm:$0xff]
    %v2216 = vld [vmem:[#allocation17 + $0x28] sm:$0xff]
    %v2217 = vld [vmem:[#allocation17 + $0x30] sm:$0xff]
    %v2218 = vld [vmem:[#allocation17 + $0x38] sm:$0xff]
    %v2219 = vld [vmem:[#allocation17 + $0x40] sm:$0xff]
    %v2220 = vld [vmem:[#allocation17 + $0x48] sm:$0xff]
    %v2221 = vld [vmem:[#allocation17 + $0x50] sm:$0xff]
    %v2222 = vld [vmem:[#allocation17 + $0x58] sm:$0xff]
    %v2223 = vld [vmem:[#allocation17 + $0x60] sm:$0xff]
    %v2224 = vld [vmem:[#allocation17 + $0x68] sm:$0xff]
    %v2225 = vld [vmem:[#allocation17 + $0x70] sm:$0xff]
    %v2226 = vld [vmem:[#allocation17 + $0x78] sm:$0xff]
    %v2227 = vld [vmem:[%s15] sm:$0x3]
    %v2229 = vlaneseq
    %v2230 = vshrl.u32 %v2229, 7
    %v2231 = vsub.s32 0, %v2230
    %v2232 = vrot.slane %v2227, %v2231
    %v2233 = vlaneseq
    %v2234 = vshrl.u32 %v2233, 7
    %v2235 = vsub.s32 1, %v2234
    %v2236 = vrot.slane %v2227, %v2235
    %v2255 = vunpack.c.l.b16 %v2211
    %v2256 = vunpack.c.h.b16 %v2211
    %v2257 = vunpack.c.l.b16 %v2212
    %v2258 = vunpack.c.h.b16 %v2212
    %v2259 = vunpack.c.l.b16 %v2213
    %v2260 = vunpack.c.h.b16 %v2213
    %v2261 = vunpack.c.l.b16 %v2214
    %v2262 = vunpack.c.h.b16 %v2214
    %v2263 = vunpack.c.l.b16 %v2215
    %v2264 = vunpack.c.h.b16 %v2215
    %v2265 = vunpack.c.l.b16 %v2216
    %v2266 = vunpack.c.h.b16 %v2216
    %v2267 = vunpack.c.l.b16 %v2217
    %v2268 = vunpack.c.h.b16 %v2217
    %v2269 = vunpack.c.l.b16 %v2218
    %v2270 = vunpack.c.h.b16 %v2218
    %v2271 = vunpack.c.l.b16 %v2219
    %v2272 = vunpack.c.h.b16 %v2219
    %v2273 = vunpack.c.l.b16 %v2220
    %v2274 = vunpack.c.h.b16 %v2220
    %v2275 = vunpack.c.l.b16 %v2221
    %v2276 = vunpack.c.h.b16 %v2221
    %v2277 = vunpack.c.l.b16 %v2222
    %v2278 = vunpack.c.h.b16 %v2222
    %v2279 = vunpack.c.l.b16 %v2223
    %v2280 = vunpack.c.h.b16 %v2223
    %v2281 = vunpack.c.l.b16 %v2224
    %v2282 = vunpack.c.h.b16 %v2224
    %v2283 = vunpack.c.l.b16 %v2225
    %v2284 = vunpack.c.h.b16 %v2225
    %v2285 = vunpack.c.l.b16 %v2226
    %v2286 = vunpack.c.h.b16 %v2226
    %v2287 = vpack.c.b16 %v2257, %v2255
    %v2288 = vpack.c.b16 %v2258, %v2256
    %v2289 = vpack.c.b16 %v2261, %v2259
    %v2290 = vpack.c.b16 %v2262, %v2260
    %v2291 = vpack.c.b16 %v2265, %v2263
    %v2292 = vpack.c.b16 %v2266, %v2264
    %v2293 = vpack.c.b16 %v2269, %v2267
    %v2294 = vpack.c.b16 %v2270, %v2268
    %v2295 = vpack.c.b16 %v2273, %v2271
    %v2296 = vpack.c.b16 %v2274, %v2272
    %v2297 = vpack.c.b16 %v2277, %v2275
    %v2298 = vpack.c.b16 %v2278, %v2276
    %v2299 = vpack.c.b16 %v2281, %v2279
    %v2300 = vpack.c.b16 %v2282, %v2280
    %v2301 = vpack.c.b16 %v2285, %v2283
    %v2302 = vpack.c.b16 %v2286, %v2284
    %2319 = vmatprep.subr.bf16.mxu0 %v2288
    %2320 = vmatpush1.bf16.msra.mxu0 %v2287
    %2321 = vmatprep.subr.bf16.mxu0 %v2290
    %2322 = vmatpush1.bf16.msra.mxu0 %v2289
    %2323 = vmatprep.subr.bf16.mxu0 %v2292
    %2324 = vmatpush1.bf16.msra.mxu0 %v2291
    %2325 = vmatprep.subr.bf16.mxu0 %v2294
    %2326 = vmatpush1.bf16.msra.mxu0 %v2293
    %2327 = vmatprep.subr.bf16.mxu0 %v2296
    %2328 = vmatpush1.bf16.msra.mxu0 %v2295
    %2329 = vmatprep.subr.bf16.mxu0 %v2298
    %2330 = vmatpush1.bf16.msra.mxu0 %v2297
    %2331 = vmatprep.subr.bf16.mxu0 %v2300
    %2332 = vmatpush1.bf16.msra.mxu0 %v2299
    %2333 = vmatprep.subr.bf16.mxu0 %v2302
    %2334 = vmatpush1.bf16.msra.mxu0 %v2301
    %2335 = vmatprep.subr.bf16.mxu0 0
    %2336 = vmatpush1.bf16.msra.mxu0 0
    %2337 = vmatprep.subr.bf16.mxu0 0
    %2338 = vmatpush1.bf16.msra.mxu0 0
    %2339 = vmatprep.subr.bf16.mxu0 0
    %2340 = vmatpush1.bf16.msra.mxu0 0
    %2341 = vmatprep.subr.bf16.mxu0 0
    %2342 = vmatpush1.bf16.msra.mxu0 0
    %2343 = vmatprep.subr.bf16.mxu0 0
    %2344 = vmatpush1.bf16.msra.mxu0 0
    %2345 = vmatprep.subr.bf16.mxu0 0
    %2346 = vmatpush1.bf16.msra.mxu0 0
    %2347 = vmatprep.subr.bf16.mxu0 0
    %2348 = vmatpush1.bf16.msra.mxu0 0
    %2349 = vmatprep.subr.bf16.mxu0 0
    %2350 = vmatpush1.bf16.msra.mxu0 0
    %2351 = vmatprep.mubr.bf16.mxu0 0
    %2352 = vmatmul.mubr.bf16.gmra.mrb[0].mxu0 %v2210
    %v2353 = vpop.f32.mrb[0].mxu0
    %v2354 = vadd.f32 %v2232, %v2353
    %v2355 = vpop.f32.mrb[0].mxu0
    %v2356 = vadd.f32 %v2236, %v2355
    %v2357 = vpop.f32.mrb[0].mxu0
    %v2358 = vadd.f32 %v2232, %v2357
    %v2359 = vpop.f32.mrb[0].mxu0
    %v2360 = vadd.f32 %v2236, %v2359
    %2361 = vdwg.mxu0
    %v2362 = vmax.f32 %v2354, 0.0
    %v2363 = vmax.f32 %v2356, 0.0
    %v2364 = vmax.f32 %v2358, 0.0
    %v2365 = vmax.f32 %v2360, 0.0
    %v2366 = vpack.c.bf16 %v2364, %v2362
    %v2367 = vpack.c.bf16 %v2365, %v2363
    %v2368 = vld [vmem:[#allocation19] sm:$0xf]
    %v2369 = vld [vmem:[#allocation19 + $0x4] sm:$0xf]
    %v2370 = vld [vmem:[#allocation19 + $0x8] sm:$0xf]
    %v2371 = vld [vmem:[#allocation19 + $0xc] sm:$0xf]
    %v2372 = vld [vmem:[#allocation19 + $0x10] sm:$0xf]
    %v2373 = vld [vmem:[#allocation19 + $0x14] sm:$0xf]
    %v2374 = vld [vmem:[#allocation19 + $0x18] sm:$0xf]
    %v2375 = vld [vmem:[#allocation19 + $0x1c] sm:$0xf]
    %v2376 = vld [vmem:[#allocation19 + $0x20] sm:$0xf]
    %v2377 = vld [vmem:[#allocation19 + $0x24] sm:$0xf]
    %v2378 = vld [vmem:[#allocation19 + $0x28] sm:$0xf]
    %v2379 = vld [vmem:[#allocation19 + $0x2c] sm:$0xf]
    %v2380 = vld [vmem:[#allocation19 + $0x30] sm:$0xf]
    %v2381 = vld [vmem:[#allocation19 + $0x34] sm:$0xf]
    %v2382 = vld [vmem:[#allocation19 + $0x38] sm:$0xf]
    %v2383 = vld [vmem:[#allocation19 + $0x3c] sm:$0xf]
    %v2384 = vld [vmem:[#allocation19 + $0x40] sm:$0xf]
    %v2385 = vld [vmem:[#allocation19 + $0x44] sm:$0xf]
    %v2386 = vld [vmem:[#allocation19 + $0x48] sm:$0xf]
    %v2387 = vld [vmem:[#allocation19 + $0x4c] sm:$0xf]
    %v2388 = vld [vmem:[#allocation19 + $0x50] sm:$0xf]
    %v2389 = vld [vmem:[#allocation19 + $0x54] sm:$0xf]
    %v2390 = vld [vmem:[#allocation19 + $0x58] sm:$0xf]
    %v2391 = vld [vmem:[#allocation19 + $0x5c] sm:$0xf]
    %v2392 = vld [vmem:[#allocation19 + $0x60] sm:$0xf]
    %v2393 = vld [vmem:[#allocation19 + $0x64] sm:$0xf]
    %v2394 = vld [vmem:[#allocation19 + $0x68] sm:$0xf]
    %v2395 = vld [vmem:[#allocation19 + $0x6c] sm:$0xf]
    %v2396 = vld [vmem:[#allocation19 + $0x70] sm:$0xf]
    %v2397 = vld [vmem:[#allocation19 + $0x74] sm:$0xf]
    %v2398 = vld [vmem:[#allocation19 + $0x78] sm:$0xf]
    %v2399 = vld [vmem:[#allocation19 + $0x7c] sm:$0xf]
    %v2400 = vld [vmem:[%s17] sm:$0x1]
    %v2402 = vlaneseq
    %v2403 = vshrl.u32 %v2402, 7
    %v2404 = vsub.s32 0, %v2403
    %v2405 = vrot.slane %v2400, %v2404
    %v2439 = vunpack.c.l.b16 %v2368
    %v2440 = vunpack.c.l.b16 %v2369
    %v2441 = vunpack.c.l.b16 %v2370
    %v2442 = vunpack.c.l.b16 %v2371
    %v2443 = vunpack.c.l.b16 %v2372
    %v2444 = vunpack.c.l.b16 %v2373
    %v2445 = vunpack.c.l.b16 %v2374
    %v2446 = vunpack.c.l.b16 %v2375
    %v2447 = vunpack.c.l.b16 %v2376
    %v2448 = vunpack.c.l.b16 %v2377
    %v2449 = vunpack.c.l.b16 %v2378
    %v2450 = vunpack.c.l.b16 %v2379
    %v2451 = vunpack.c.l.b16 %v2380
    %v2452 = vunpack.c.l.b16 %v2381
    %v2453 = vunpack.c.l.b16 %v2382
    %v2454 = vunpack.c.l.b16 %v2383
    %v2455 = vunpack.c.l.b16 %v2384
    %v2456 = vunpack.c.l.b16 %v2385
    %v2457 = vunpack.c.l.b16 %v2386
    %v2458 = vunpack.c.l.b16 %v2387
    %v2459 = vunpack.c.l.b16 %v2388
    %v2460 = vunpack.c.l.b16 %v2389
    %v2461 = vunpack.c.l.b16 %v2390
    %v2462 = vunpack.c.l.b16 %v2391
    %v2463 = vunpack.c.l.b16 %v2392
    %v2464 = vunpack.c.l.b16 %v2393
    %v2465 = vunpack.c.l.b16 %v2394
    %v2466 = vunpack.c.l.b16 %v2395
    %v2467 = vunpack.c.l.b16 %v2396
    %v2468 = vunpack.c.l.b16 %v2397
    %v2469 = vunpack.c.l.b16 %v2398
    %v2470 = vunpack.c.l.b16 %v2399
    %v2471 = vpack.c.b16 %v2440, %v2439
    %v2472 = vpack.c.b16 %v2442, %v2441
    %v2473 = vpack.c.b16 %v2444, %v2443
    %v2474 = vpack.c.b16 %v2446, %v2445
    %v2475 = vpack.c.b16 %v2448, %v2447
    %v2476 = vpack.c.b16 %v2450, %v2449
    %v2477 = vpack.c.b16 %v2452, %v2451
    %v2478 = vpack.c.b16 %v2454, %v2453
    %v2479 = vpack.c.b16 %v2456, %v2455
    %v2480 = vpack.c.b16 %v2458, %v2457
    %v2481 = vpack.c.b16 %v2460, %v2459
    %v2482 = vpack.c.b16 %v2462, %v2461
    %v2483 = vpack.c.b16 %v2464, %v2463
    %v2484 = vpack.c.b16 %v2466, %v2465
    %v2485 = vpack.c.b16 %v2468, %v2467
    %v2486 = vpack.c.b16 %v2470, %v2469
    %2503 = vmatprep.subr.bf16.mxu0 0
    %2504 = vmatpush1.bf16.msra.mxu0 %v2471
    %2505 = vmatprep.subr.bf16.mxu0 0
    %2506 = vmatpush1.bf16.msra.mxu0 %v2472
    %2507 = vmatprep.subr.bf16.mxu0 0
    %2508 = vmatpush1.bf16.msra.mxu0 %v2473
    %2509 = vmatprep.subr.bf16.mxu0 0
    %2510 = vmatpush1.bf16.msra.mxu0 %v2474
    %2511 = vmatprep.subr.bf16.mxu0 0
    %2512 = vmatpush1.bf16.msra.mxu0 %v2475
    %2513 = vmatprep.subr.bf16.mxu0 0
    %2514 = vmatpush1.bf16.msra.mxu0 %v2476
    %2515 = vmatprep.subr.bf16.mxu0 0
    %2516 = vmatpush1.bf16.msra.mxu0 %v2477
    %2517 = vmatprep.subr.bf16.mxu0 0
    %2518 = vmatpush1.bf16.msra.mxu0 %v2478
    %2519 = vmatprep.subr.bf16.mxu0 0
    %2520 = vmatpush1.bf16.msra.mxu0 %v2479
    %2521 = vmatprep.subr.bf16.mxu0 0
    %2522 = vmatpush1.bf16.msra.mxu0 %v2480
    %2523 = vmatprep.subr.bf16.mxu0 0
    %2524 = vmatpush1.bf16.msra.mxu0 %v2481
    %2525 = vmatprep.subr.bf16.mxu0 0
    %2526 = vmatpush1.bf16.msra.mxu0 %v2482
    %2527 = vmatprep.subr.bf16.mxu0 0
    %2528 = vmatpush1.bf16.msra.mxu0 %v2483
    %2529 = vmatprep.subr.bf16.mxu0 0
    %2530 = vmatpush1.bf16.msra.mxu0 %v2484
    %2531 = vmatprep.subr.bf16.mxu0 0
    %2532 = vmatpush1.bf16.msra.mxu0 %v2485
    %2533 = vmatprep.subr.bf16.mxu0 0
    %2534 = vmatpush1.bf16.msra.mxu0 %v2486
    %2535 = vmatprep.mubr.bf16.mxu0 %v2367
    %2536 = vmatmul.mubr.bf16.gmra.mrb[0].mxu0 %v2366
    %v2537 = vpop.f32.mrb[0].mxu0
    %v2538 = vadd.f32 %v2405, %v2537
    %v2539 = vpop.f32.mrb[0].mxu0
    %v2540 = vpop.f32.mrb[0].mxu0
    %v2541 = vadd.f32 %v2405, %v2540
    %v2542 = vpop.f32.mrb[0].mxu0
    %2543 = vdwg.mxu0
    %v2544 = vadd.f32 %v2208, %v2538
    %v2545 = vadd.f32 %v2209, %v2541
    %2546 = vadd.xlane.f32.xlu0 %v2544
    %v2547 = vpop.xlane.xlu0 %2546
    %2548 = vadd.xlane.f32.xlu0 %v2545
    %v2549 = vpop.xlane.xlu0 %2548
    %v2550 = vmul.f32 %v2547, %v1181
    %v2551 = vmul.f32 %v2549, %v1181
    %v2552 = vmul.f32 %v2544, %v2544
    %v2553 = vmul.f32 %v2545, %v2545
    %2554 = vadd.xlane.f32.xlu0 %v2552
    %v2555 = vpop.xlane.xlu0 %2554
    %2556 = vadd.xlane.f32.xlu0 %v2553
    %v2557 = vpop.xlane.xlu0 %2556
    %v2558 = vmul.f32 %v2555, %v1181
    %v2559 = vmul.f32 %v2557, %v1181
    %v2560 = vmul.f32 %v2550, %v2550
    %v2561 = vmul.f32 %v2551, %v2551
    %v2562 = vsub.f32 %v2558, %v2560
    %v2563 = vsub.f32 %v2559, %v2561
    %v2564 = vsub.f32 %v2544, %v2550
    %v2565 = vsub.f32 %v2545, %v2551
    %v2566 = vadd.f32 %v2562, 1e-05
    %v2567 = vadd.f32 %v2563, 1e-05
    %v2568 = vrsqrt.pop %v2566
    %v2569 = vrsqrt.pop %v2567
    %v2570 = vmul.f32 %v2564, %v2568
    %v2571 = vmul.f32 %v2565, %v2569
    %v2572 = vld [vmem:[%s22] sm:$0x1]
    %v2574 = vlaneseq
    %v2575 = vshrl.u32 %v2574, 7
    %v2576 = vsub.s32 0, %v2575
    %v2577 = vrot.slane %v2572, %v2576
    %v2579 = vmul.f32 %v2577, %v2570
    %v2580 = vmul.f32 %v2577, %v2571
    %v2581 = vld [vmem:[%s23] sm:$0x1]
    %v2583 = vlaneseq
    %v2584 = vshrl.u32 %v2583, 7
    %v2585 = vsub.s32 0, %v2584
    %v2586 = vrot.slane %v2581, %v2585
    %v2588 = vadd.f32 %v2579, %v2586
    %v2589 = vadd.f32 %v2580, %v2586
    %2590 = vst [vmem:[#allocation20] sm:$0xff] %v2588
    %2591 = vst [vmem:[#allocation20 + $0x8] sm:$0xff] %v2589
    // Predicated region
    $region142: #{tpu_custom_call.1} parent=1 // pred_check
      _
    $region143: #{tpu_custom_call.1} parent=1 // pred_check_branch
      %2593 = sbr.rel (0) target = $region145
    $region144: #{tpu_custom_call.1} parent=1 // pred_region
      %s2595 = ssub.s32 256, 256
      %2596 = vsyncadd [#allocation4], %s2595
      %s2597 = sshll.u32 [#allocation20], 4
      %s2598 = int_to_ptr.vmem [resolvable:$true] %s2597
      %2603 = dma.vmem_to_hbm [thread:$0]  %s2598, 256, %s24, [#allocation4], 128, 128, 8
    $region145: #{tpu_custom_call.1} parent=1 // pred_fallthru
      _
    // Predicated region
    $region146: #{tpu_custom_call.1} parent=1 // pred_check
      _
    $region147: #{tpu_custom_call.1} parent=1 // pred_check_branch
      %2605 = sbr.rel (0) target = $region149
    $region148: #{tpu_custom_call.1} parent=1 // pred_region
      %2606 = dma.done [#allocation4], 256
    $region149: #{tpu_custom_call.1} parent=1 // pred_fallthru
      _
    %2607 = vsyncpa [#allocation3], 1
    %2608 = vsyncpa [#allocation6], 1
    %2609 = vsyncpa [#allocation9], 1
    %2610 = vsyncpa [#allocation12], 1
    %2611 = vsyncpa [#allocation15], 1
    %2612 = vsyncpa [#allocation18], 1
    %2613 = vsyncpa [#allocation4], 1

</llo_original>
